<compile_context>
chip_gen: v7x
topology: tpu7x:2x2x1
jax: 0.10.0
libtpu: 0.0.40
codegen_flags: <defaults>
</compile_context>

<pallas_src>
import numpy as np
import jax
import jax.numpy as jnp
from jax.experimental import pallas as pl
from jax.experimental.pallas import tpu as pltpu


def _round_up(n, m):
    return (n + m - 1) // m * m


def _choose_tile(batch, tb_max):
    """Batch tile: one tile for small batches; otherwise >=2 MXU-friendly
    (multiple-of-128) tiles so v7x's dual TensorCores both get work, capped at
    tb_max to bound per-step VMEM."""
    b8 = _round_up(batch, 8)
    if b8 < 256:
        return b8                              # single tile, grid=(1,)
    half = _round_up(pl.cdiv(b8, 2), 128)      # aim for >= 2 tiles
    return max(128, min(tb_max, half))


def _critic_kernel(x_ref, a_ref,
                   w1x_ref, w1a_ref, b1_ref,
                   w2_ref, b2_ref,
                   w3_ref, b3_ref,
                   w4_ref, b4_ref,
                   o_ref):
    bf16 = jnp.bfloat16
    f32 = jnp.float32
    # fc1 (concat folded into split weights): x@W1x + a@W1a + b1, ReLU.
    h = (jnp.dot(x_ref[...].astype(bf16), w1x_ref[...], preferred_element_type=f32)
         + jnp.dot(a_ref[...].astype(bf16), w1a_ref[...], preferred_element_type=f32))
    h = jnp.maximum(h + b1_ref[...], 0.0)
    # fc2: (TB, 512) @ (512, 384), ReLU.
    h = jnp.maximum(
        jnp.dot(h.astype(bf16), w2_ref[...], preferred_element_type=f32) + b2_ref[...],
        0.0)
    # fc3: (TB, 384) @ (384, 256), ReLU.
    h = jnp.maximum(
        jnp.dot(h.astype(bf16), w3_ref[...], preferred_element_type=f32) + b3_ref[...],
        0.0)
    # fc4: N=1 head as VPU multiply + cross-lane reduce (w4 kept in f32).
    col = jnp.sum(h * w4_ref[...], axis=-1, keepdims=True) + b4_ref[...]   # (TB, 1)
    # Lane-dense store: write a (1, TB) row instead of a masked (TB, 1) column.
    o_ref[...] = col.reshape(1, -1).astype(o_ref.dtype)


def critic_forward(x, action, params, *, tb=1024):
    """x: (B, state_dim), action: (B, action_dim) -> (B, 1) float32."""
    B, S = x.shape
    _, A = action.shape
    (w1x, w1a, b1), (w2, b2), (w3, b3), (w4row, b4) = params

    TB = _choose_tile(B, tb)
    Bp = _round_up(B, TB)
    ntiles = Bp // TB
    if Bp != B:
        # Padded batch rows produce garbage through the biases/ReLU; they are
        # sliced off below and never reused.
        pad = Bp - B
        x = jnp.pad(x, ((0, pad), (0, 0)))
        action = jnp.pad(action, ((0, pad), (0, 0)))

    # Deeper input buffering only pays off (and is only exercised) on grids
    # with >= 3 steps; default double-buffering otherwise.
    stream_kwargs = {"pipeline_mode": pl.Buffered(3)} if ntiles >= 3 else {}
    stream = lambda d: pl.BlockSpec((TB, d), lambda i: (i, 0), **stream_kwargs)
    resident = lambda arr: pl.BlockSpec(arr.shape, lambda i: (0, 0))

    out = pl.pallas_call(
        _critic_kernel,
        out_shape=jax.ShapeDtypeStruct((1, Bp), jnp.float32),
        grid=(ntiles,),
        in_specs=[
            stream(S), stream(A),
            resident(w1x), resident(w1a), resident(b1),
            resident(w2), resident(b2),
            resident(w3), resident(b3),
            resident(w4row), resident(b4),
        ],
        out_specs=pl.BlockSpec((1, TB), lambda i: (0, i)),
        compiler_params=pltpu.CompilerParams(
            dimension_semantics=("parallel",)),
    )(x, action, w1x, w1a, b1, w2, b2, w3, b3, w4row, b4)
    return out[0, :B][:, None]


def init_critic_params(key, state_dim, action_dim, weight_dtype=jnp.bfloat16):
    """PyTorch-style init U(-1/sqrt(fan_in), +1/sqrt(fan_in)).

    Returns (packed_params, raw_params):
      packed: weights transposed to (in, out), hidden dims zero-padded to
        512/384/256, fc1 split into x/action parts, fc4 stored as a f32
        (1, 256) row; fc1-fc3 weights cast to `weight_dtype` (bf16 MXU path),
        all biases f32.
      raw: the unpadded f32 (w, b) list matching the exact PyTorch model.
    """
    dims = [state_dim + action_dim, 400, 300, 200, 1]
    raw = []
    for fan_in, fan_out in zip(dims[:-1], dims[1:]):
        key, kw, kb = jax.random.split(key, 3)
        bound = float(1.0 / np.sqrt(fan_in))
        w = jax.random.uniform(kw, (fan_in, fan_out), jnp.float32, -bound, bound)
        b = jax.random.uniform(kb, (1, fan_out), jnp.float32, -bound, bound)
        raw.append((w, b))

    (w1, b1), (w2, b2), (w3, b3), (w4, b4) = raw
    S, A = state_dim, action_dim
    H1p, H2p, H3p = _round_up(400, 128), _round_up(300, 128), _round_up(200, 128)

    def pad(arr, shape):
        return jnp.zeros(shape, arr.dtype).at[:arr.shape[0], :arr.shape[1]].set(arr)

    w1p, b1p = pad(w1, (S + A, H1p)), pad(b1, (1, H1p))
    w1x, w1a = w1p[:S], w1p[S:]
    w2p, b2p = pad(w2, (H1p, H2p)), pad(b2, (1, H2p))
    w3p, b3p = pad(w3, (H2p, H3p)), pad(b3, (1, H3p))
    w4row = pad(w4.T, (1, H3p))          # stays f32: 1 KB, no double rounding

    wd = weight_dtype
    packed = ((w1x.astype(wd), w1a.astype(wd), b1p),
              (w2p.astype(wd), b2p),
              (w3p.astype(wd), b3p),
              (w4row, b4))
    return packed, raw


def critic_ref(x, action, packed):
    """Pure-JAX reference mirroring the kernel math (bf16 MXU, f32 accum)."""
    (w1x, w1a, b1), (w2, b2), (w3, b3), (w4row, b4) = packed
    bf16 = jnp.bfloat16
    f32 = jnp.float32
    h = (jnp.dot(x.astype(bf16), w1x, preferred_element_type=f32)
         + jnp.dot(action.astype(bf16), w1a, preferred_element_type=f32))
    h = jax.nn.relu(h + b1)
    h = jax.nn.relu(jnp.dot(h.astype(bf16), w2, preferred_element_type=f32) + b2)
    h = jax.nn.relu(jnp.dot(h.astype(bf16), w3, preferred_element_type=f32) + b3)
    return jnp.sum(h * w4row, axis=-1, keepdims=True) + b4


def critic_ref_f32(x, action, raw):
    """Exact f32 reference of the original PyTorch model (unpadded weights)."""
    h = jnp.concatenate([x, action], axis=1)
    n = len(raw)
    for i, (w, b) in enumerate(raw):
        h = h @ w + b
        if i < n - 1:
            h = jax.nn.relu(h)
    return h


if __name__ == "__main__":
    state_dim, action_dim = 16, 8
    key = jax.random.PRNGKey(0)
    key, kp = jax.random.split(key)
    params, raw_params = init_critic_params(kp, state_dim, action_dim)

    def run_case(case_key, batch, tb):
        kx, ka = jax.random.split(case_key)
        x = jax.random.normal(kx, (batch, state_dim), jnp.float32)
        a = jax.random.normal(ka, (batch, action_dim), jnp.float32)
        out = jax.block_until_ready(critic_forward(x, a, params, tb=tb))
        assert out.shape == (batch, 1), out.shape
        # Tight check vs a reference using the same bf16/padded params.
        ref_b = critic_ref(x, a, params)
        assert jnp.allclose(out, ref_b, atol=2e-3, rtol=2e-3), (
            float(jnp.max(jnp.abs(out - ref_b))))
        # Loose check vs the exact f32 PyTorch-style model (catches padding /
        # fc1-split / layout bugs; bf16 weights are an intentional ~1e-3
        # relative precision trade-off).
        ref_f = critic_ref_f32(x, a, raw_params)
        assert jnp.allclose(out, ref_f, atol=5e-2, rtol=5e-2), (
            float(jnp.max(jnp.abs(out - ref_f))))

    k1, k2, k3 = jax.random.split(key, 3)
    run_case(k1, 8, 1024)     # tiny batch: single tile, grid=(1,)
    run_case(k2, 260, 1024)   # padded batch split into 2 tiles (dual-TC friendly)
    run_case(k3, 260, 128)    # tb override -> grid=(3,), exercises Buffered(3)
    print("KERNEL_OK")
</pallas_src>

<mosaic_0001>
module attributes {stable_mosaic.version = 11 : i64} {
  func.func @_critic_kernel(%arg0: i32, %arg1: memref<8x16xf32, #tpu.memory_space<vmem>>, %arg2: memref<8x8xf32, #tpu.memory_space<vmem>>, %arg3: memref<16x512xbf16, #tpu.memory_space<vmem>>, %arg4: memref<8x512xbf16, #tpu.memory_space<vmem>>, %arg5: memref<1x512xf32, #tpu.memory_space<vmem>>, %arg6: memref<512x384xbf16, #tpu.memory_space<vmem>>, %arg7: memref<1x384xf32, #tpu.memory_space<vmem>>, %arg8: memref<384x256xbf16, #tpu.memory_space<vmem>>, %arg9: memref<1x256xf32, #tpu.memory_space<vmem>>, %arg10: memref<1x256xf32, #tpu.memory_space<vmem>>, %arg11: memref<1x1xf32, #tpu.memory_space<vmem>>, %arg12: memref<1x8xf32, #tpu.memory_space<vmem>>) attributes {dimension_semantics = [#tpu.dimension_semantics<parallel>], iteration_bounds = array<i64: 1>, scalar_prefetch = 0 : i64, scratch_operands = 0 : i64, tpu.core_type = #tpu.core_type<tc>, window_params = [{transform_indices = @transform_0, window_bounds = array<i64: 8, 16>}, {transform_indices = @transform_1, window_bounds = array<i64: 8, 8>}, {pipeline_mode = #tpu.pipeline_mode<synchronous>, transform_indices = @transform_2, window_bounds = array<i64: 16, 512>}, {pipeline_mode = #tpu.pipeline_mode<synchronous>, transform_indices = @transform_3, window_bounds = array<i64: 8, 512>}, {pipeline_mode = #tpu.pipeline_mode<synchronous>, transform_indices = @transform_4, window_bounds = array<i64: 1, 512>}, {pipeline_mode = #tpu.pipeline_mode<synchronous>, transform_indices = @transform_5, window_bounds = array<i64: 512, 384>}, {pipeline_mode = #tpu.pipeline_mode<synchronous>, transform_indices = @transform_6, window_bounds = array<i64: 1, 384>}, {pipeline_mode = #tpu.pipeline_mode<synchronous>, transform_indices = @transform_7, window_bounds = array<i64: 384, 256>}, {pipeline_mode = #tpu.pipeline_mode<synchronous>, transform_indices = @transform_8, window_bounds = array<i64: 1, 256>}, {pipeline_mode = #tpu.pipeline_mode<synchronous>, transform_indices = @transform_9, window_bounds = array<i64: 1, 256>}, {pipeline_mode = #tpu.pipeline_mode<synchronous>, transform_indices = @transform_10, window_bounds = array<i64: 1, 1>}, {transform_indices = @transform_11, window_bounds = array<i64: 1, 8>}]} {
    %c0 = arith.constant 0 : index
    %c0_0 = arith.constant 0 : index
    %0 = vector.load %arg1[%c0, %c0_0] : memref<8x16xf32, #tpu.memory_space<vmem>>, vector<8x16xf32>
    %1 = arith.truncf %0 : vector<8x16xf32> to vector<8x16xbf16>
    %c0_1 = arith.constant 0 : index
    %c0_2 = arith.constant 0 : index
    %2 = vector.load %arg3[%c0_1, %c0_2] : memref<16x512xbf16, #tpu.memory_space<vmem>>, vector<16x512xbf16>
    %cst = arith.constant dense<0.000000e+00> : vector<8x512xf32>
    %3 = tpu.matmul %1, %2, %cst {dimension_numbers = #tpu.dot_dimension_numbers<[1], [0], [0], [1], [0, 0, 1, 1], [], []>} : vector<8x16xbf16>, vector<16x512xbf16>, vector<8x512xf32> -> vector<8x512xf32>
    %c0_3 = arith.constant 0 : index
    %c0_4 = arith.constant 0 : index
    %4 = vector.load %arg2[%c0_3, %c0_4] : memref<8x8xf32, #tpu.memory_space<vmem>>, vector<8x8xf32>
    %5 = arith.truncf %4 : vector<8x8xf32> to vector<8x8xbf16>
    %c0_5 = arith.constant 0 : index
    %c0_6 = arith.constant 0 : index
    %6 = vector.load %arg4[%c0_5, %c0_6] : memref<8x512xbf16, #tpu.memory_space<vmem>>, vector<8x512xbf16>
    %cst_7 = arith.constant dense<0.000000e+00> : vector<8x512xf32>
    %7 = tpu.matmul %5, %6, %cst_7 {dimension_numbers = #tpu.dot_dimension_numbers<[1], [0], [0], [1], [0, 0, 1, 1], [], []>} : vector<8x8xbf16>, vector<8x512xbf16>, vector<8x512xf32> -> vector<8x512xf32>
    %8 = arith.addf %3, %7 : vector<8x512xf32>
    %c0_8 = arith.constant 0 : index
    %c0_9 = arith.constant 0 : index
    %9 = vector.load %arg5[%c0_8, %c0_9] : memref<1x512xf32, #tpu.memory_space<vmem>>, vector<1x512xf32>
    %10 = vector.broadcast %9 : vector<1x512xf32> to vector<8x512xf32>
    %11 = arith.addf %8, %10 : vector<8x512xf32>
    %cst_10 = arith.constant 0.000000e+00 : f32
    %12 = vector.broadcast %cst_10 : f32 to vector<8x512xf32>
    %13 = arith.maximumf %11, %12 : vector<8x512xf32>
    %14 = arith.truncf %13 : vector<8x512xf32> to vector<8x512xbf16>
    %c0_11 = arith.constant 0 : index
    %c0_12 = arith.constant 0 : index
    %15 = vector.load %arg6[%c0_11, %c0_12] : memref<512x384xbf16, #tpu.memory_space<vmem>>, vector<512x384xbf16>
    %cst_13 = arith.constant dense<0.000000e+00> : vector<8x384xf32>
    %16 = tpu.matmul %14, %15, %cst_13 {dimension_numbers = #tpu.dot_dimension_numbers<[1], [0], [0], [1], [0, 0, 1, 1], [], []>} : vector<8x512xbf16>, vector<512x384xbf16>, vector<8x384xf32> -> vector<8x384xf32>
    %c0_14 = arith.constant 0 : index
    %c0_15 = arith.constant 0 : index
    %17 = vector.load %arg7[%c0_14, %c0_15] : memref<1x384xf32, #tpu.memory_space<vmem>>, vector<1x384xf32>
    %18 = vector.broadcast %17 : vector<1x384xf32> to vector<8x384xf32>
    %19 = arith.addf %16, %18 : vector<8x384xf32>
    %cst_16 = arith.constant 0.000000e+00 : f32
    %20 = vector.broadcast %cst_16 : f32 to vector<8x384xf32>
    %21 = arith.maximumf %19, %20 : vector<8x384xf32>
    %22 = arith.truncf %21 : vector<8x384xf32> to vector<8x384xbf16>
    %c0_17 = arith.constant 0 : index
    %c0_18 = arith.constant 0 : index
    %23 = vector.load %arg8[%c0_17, %c0_18] : memref<384x256xbf16, #tpu.memory_space<vmem>>, vector<384x256xbf16>
    %cst_19 = arith.constant dense<0.000000e+00> : vector<8x256xf32>
    %24 = tpu.matmul %22, %23, %cst_19 {dimension_numbers = #tpu.dot_dimension_numbers<[1], [0], [0], [1], [0, 0, 1, 1], [], []>} : vector<8x384xbf16>, vector<384x256xbf16>, vector<8x256xf32> -> vector<8x256xf32>
    %c0_20 = arith.constant 0 : index
    %c0_21 = arith.constant 0 : index
    %25 = vector.load %arg9[%c0_20, %c0_21] : memref<1x256xf32, #tpu.memory_space<vmem>>, vector<1x256xf32>
    %26 = vector.broadcast %25 : vector<1x256xf32> to vector<8x256xf32>
    %27 = arith.addf %24, %26 : vector<8x256xf32>
    %cst_22 = arith.constant 0.000000e+00 : f32
    %28 = vector.broadcast %cst_22 : f32 to vector<8x256xf32>
    %29 = arith.maximumf %27, %28 : vector<8x256xf32>
    %c0_23 = arith.constant 0 : index
    %c0_24 = arith.constant 0 : index
    %30 = vector.load %arg10[%c0_23, %c0_24] : memref<1x256xf32, #tpu.memory_space<vmem>>, vector<1x256xf32>
    %31 = vector.broadcast %30 : vector<1x256xf32> to vector<8x256xf32>
    %32 = arith.mulf %29, %31 : vector<8x256xf32>
    %cst_25 = arith.constant dense<0.000000e+00> : vector<8xf32>
    %33 = vector.multi_reduction <add>, %32, %cst_25 [1] : vector<8x256xf32> to vector<8xf32>
    %34 = vector.shape_cast %33 : vector<8xf32> to vector<8x1xf32>
    %c0_26 = arith.constant 0 : index
    %c0_27 = arith.constant 0 : index
    %35 = vector.load %arg11[%c0_26, %c0_27] : memref<1x1xf32, #tpu.memory_space<vmem>>, vector<1x1xf32>
    %36 = vector.broadcast %35 : vector<1x1xf32> to vector<8x1xf32>
    %37 = arith.addf %34, %36 : vector<8x1xf32>
    %38 = vector.shape_cast %37 : vector<8x1xf32> to vector<1x8xf32>
    %c0_28 = arith.constant 0 : index
    %c0_29 = arith.constant 0 : index
    %39 = vector.load %arg12[%c0_28, %c0_29] : memref<1x8xf32, #tpu.memory_space<vmem>>, vector<1x8xf32>
    tpu.vector_store %arg12[%c0_28, %c0_29], %38 {strides = array<i32>} : memref<1x8xf32, #tpu.memory_space<vmem>>, vector<1x8xf32>,
    return
  }
  func.func @transform_0(%arg0: i32) -> (i32, i32) {
    %c0_i32 = arith.constant 0 : i32
    %c0_i32_0 = arith.constant 0 : i32
    return %arg0, %c0_i32 : i32, i32
  }
  func.func @transform_1(%arg0: i32) -> (i32, i32) {
    %c0_i32 = arith.constant 0 : i32
    %c0_i32_0 = arith.constant 0 : i32
    return %arg0, %c0_i32 : i32, i32
  }
  func.func @transform_2(%arg0: i32) -> (i32, i32) {
    %c0_i32 = arith.constant 0 : i32
    %c0_i32_0 = arith.constant 0 : i32
    %c0_i32_1 = arith.constant 0 : i32
    return %c0_i32, %c0_i32_0 : i32, i32
  }
  func.func @transform_3(%arg0: i32) -> (i32, i32) {
    %c0_i32 = arith.constant 0 : i32
    %c0_i32_0 = arith.constant 0 : i32
    %c0_i32_1 = arith.constant 0 : i32
    return %c0_i32, %c0_i32_0 : i32, i32
  }
  func.func @transform_4(%arg0: i32) -> (i32, i32) {
    %c0_i32 = arith.constant 0 : i32
    %c0_i32_0 = arith.constant 0 : i32
    %c0_i32_1 = arith.constant 0 : i32
    return %c0_i32, %c0_i32_0 : i32, i32
  }
  func.func @transform_5(%arg0: i32) -> (i32, i32) {
    %c0_i32 = arith.constant 0 : i32
    %c0_i32_0 = arith.constant 0 : i32
    %c0_i32_1 = arith.constant 0 : i32
    return %c0_i32, %c0_i32_0 : i32, i32
  }
  func.func @transform_6(%arg0: i32) -> (i32, i32) {
    %c0_i32 = arith.constant 0 : i32
    %c0_i32_0 = arith.constant 0 : i32
    %c0_i32_1 = arith.constant 0 : i32
    return %c0_i32, %c0_i32_0 : i32, i32
  }
  func.func @transform_7(%arg0: i32) -> (i32, i32) {
    %c0_i32 = arith.constant 0 : i32
    %c0_i32_0 = arith.constant 0 : i32
    %c0_i32_1 = arith.constant 0 : i32
    return %c0_i32, %c0_i32_0 : i32, i32
  }
  func.func @transform_8(%arg0: i32) -> (i32, i32) {
    %c0_i32 = arith.constant 0 : i32
    %c0_i32_0 = arith.constant 0 : i32
    %c0_i32_1 = arith.constant 0 : i32
    return %c0_i32, %c0_i32_0 : i32, i32
  }
  func.func @transform_9(%arg0: i32) -> (i32, i32) {
    %c0_i32 = arith.constant 0 : i32
    %c0_i32_0 = arith.constant 0 : i32
    %c0_i32_1 = arith.constant 0 : i32
    return %c0_i32, %c0_i32_0 : i32, i32
  }
  func.func @transform_10(%arg0: i32) -> (i32, i32) {
    %c0_i32 = arith.constant 0 : i32
    %c0_i32_0 = arith.constant 0 : i32
    %c0_i32_1 = arith.constant 0 : i32
    return %c0_i32, %c0_i32_0 : i32, i32
  }
  func.func @transform_11(%arg0: i32) -> (i32, i32) {
    %c0_i32 = arith.constant 0 : i32
    %c0_i32_0 = arith.constant 0 : i32
    return %c0_i32, %arg0 : i32, i32
  }
}

</mosaic_0001>

<llo_original>
// kernel: tpu_custom_call.1
$region0: #{tpu_custom_call.1}
  #allocation0 [shape = 'u32[]', space=smem, size = 0x4, offset = 0x4, fixed_abs, tag = 'smem constant byte address 0x4 - core index']
  #allocation1 [shape = 'u32[144,128]{1,0:T(1,128)}', space=vmem, size = 0x12000, scoped, tag = 'internal scratch']
  #allocation2 [shape = 'f32[1,1]{1,0:T(1,128)S(1)}', space=vmem, size = 0x200, scoped, tag = 'scoped memory for tpu_custom_call.1']
  %s0 = inlined_call_operand.hbm [shape: f32[8,16], index: 0, kind: input, shape index: {}]
  %s1 = inlined_call_operand.hbm [shape: f32[8,8], index: 1, kind: input, shape index: {}]
  %s2 = inlined_call_operand.hbm [shape: bf16[16,512], index: 2, kind: input, shape index: {}]
  %s3 = inlined_call_operand.hbm [shape: bf16[8,512], index: 3, kind: input, shape index: {}]
  %s4 = inlined_call_operand.vmem [shape: f32[1,512], index: 4, kind: input, shape index: {}]
  %s5 = inlined_call_operand.hbm [shape: bf16[512,384], index: 5, kind: input, shape index: {}]
  %s6 = inlined_call_operand.vmem [shape: f32[1,384], index: 6, kind: input, shape index: {}]
  %s7 = inlined_call_operand.hbm [shape: bf16[384,256], index: 7, kind: input, shape index: {}]
  %s8 = inlined_call_operand.vmem [shape: f32[1,256], index: 8, kind: input, shape index: {}]
  %s9 = inlined_call_operand.vmem [shape: f32[1,256], index: 9, kind: input, shape index: {}]
  %s10 = inlined_call_operand.<no memory space> [shape: f32[1,1], index: 10, kind: input, shape index: {}]
  %s11 = inlined_call_operand.hbm [shape: f32[1,8], index: 11, kind: output, shape index: {}]
  %s12 = sld [smem:[#allocation0]]
  $region78: #{tpu_custom_call.1} parent=0
    _
  %s14 = ssub.s32 1, %s12
  %s15 = scalar_select 0, %s14, %s12
  %v16 = vstv %s10
  %17 = vst [vmem:[#allocation2] sm:$0x1] %v16
  $region1: #{tpu_custom_call.1} parent=0
    #allocation3 [shape = 'u8[4096]{0}', space=vmem, size = 0x1000, scoped, tag = 'input window, operand 0, single buffered']
    #allocation4 [shape = 's32[1]{0}', space=sflag, size = 0x4, scoped, tag = 'scoped memory for tpu_custom_call.1']
    #allocation5 [shape = 's32[1]{0}', space=sflag, size = 0x4, scoped, tag = 'scoped memory for tpu_custom_call.1']
    #allocation6 [shape = 'u8[4096]{0}', space=vmem, size = 0x1000, scoped, tag = 'input window, operand 1, single buffered']
    #allocation7 [shape = 's32[1]{0}', space=sflag, size = 0x4, scoped, tag = 'scoped memory for tpu_custom_call.1']
    #allocation8 [shape = 'u8[16384]{0}', space=vmem, size = 0x4000, scoped, tag = 'input window, operand 2, single buffered']
    #allocation9 [shape = 'u8[8192]{0}', space=vmem, size = 0x2000, scoped, tag = 'input window, operand 3, single buffered']
    #allocation10 [shape = 's32[1]{0}', space=sflag, size = 0x4, scoped, tag = 'scoped memory for tpu_custom_call.1']
    #allocation11 [shape = 'u8[393216]{0}', space=vmem, size = 0x60000, scoped, tag = 'input window, operand 5, single buffered']
    #allocation12 [shape = 'u8[196608]{0}', space=vmem, size = 0x30000, scoped, tag = 'input window, operand 7, single buffered']
    #allocation13 [shape = 's32[1]{0}', space=sflag, size = 0x4, scoped, tag = 'scoped memory for tpu_custom_call.1']
    #allocation14 [shape = 'u8[512]{0}', space=vmem, size = 0x400, scoped, tag = 'output window, operand 0, single buffered']
    %18 = vsyncpa [#allocation4], 0
    %19 = vsyncpa [#allocation7], 0
    %20 = vsyncpa [#allocation10], 0
    %21 = vsyncpa [#allocation13], 0
    %22 = vsyncpa [#allocation5], 0
    // Predicated region
    $region2: #{tpu_custom_call.1} parent=1 // pred_check
      _
    $region3: #{tpu_custom_call.1} parent=1 // pred_check_branch
      %24 = sbr.rel (0) target = $region5
    $region4: #{tpu_custom_call.1} parent=1 // pred_region
      %s26 = ssub.s32 128, 128
      %27 = vsyncadd [#allocation4], %s26
      %s29 = sshll.u32 [#allocation3], 4
      %s30 = int_to_ptr.vmem [resolvable:$true] %s29
      %32 = dma.hbm_to_vmem [thread:$0]  %s0, 128, %s30, [#allocation4]
    $region5: #{tpu_custom_call.1} parent=1 // pred_fallthru
      _
    // Predicated region
    $region6: #{tpu_custom_call.1} parent=1 // pred_check
      _
    $region7: #{tpu_custom_call.1} parent=1 // pred_check_branch
      %34 = sbr.rel (0) target = $region9
    $region8: #{tpu_custom_call.1} parent=1 // pred_region
      %s36 = ssub.s32 128, 128
      %37 = vsyncadd [#allocation7], %s36
      %s39 = sshll.u32 [#allocation6], 4
      %s40 = int_to_ptr.vmem [resolvable:$true] %s39
      %42 = dma.hbm_to_vmem [thread:$0]  %s1, 128, %s40, [#allocation7]
    $region9: #{tpu_custom_call.1} parent=1 // pred_fallthru
      _
    // Predicated region
    $region10: #{tpu_custom_call.1} parent=1 // pred_check
      _
    $region11: #{tpu_custom_call.1} parent=1 // pred_check_branch
      %44 = sbr.rel (0) target = $region13
    $region12: #{tpu_custom_call.1} parent=1 // pred_region
      %s46 = ssub.s32 512, 512
      %47 = vsyncadd [#allocation7], %s46
      %s48 = sshll.u32 [#allocation8], 4
      %s49 = int_to_ptr.vmem [resolvable:$true] %s48
      %54 = dma.hbm_to_vmem [thread:$0]  %s2, 512, %s49, [#allocation7], 256, 256, 16
    $region13: #{tpu_custom_call.1} parent=1 // pred_fallthru
      _
    // Predicated region
    $region14: #{tpu_custom_call.1} parent=1 // pred_check
      _
    $region15: #{tpu_custom_call.1} parent=1 // pred_check_branch
      %56 = sbr.rel (0) target = $region17
    $region16: #{tpu_custom_call.1} parent=1 // pred_region
      %s58 = ssub.s32 256, 256
      %59 = vsyncadd [#allocation10], %s58
      %s61 = sshll.u32 [#allocation9], 4
      %s62 = int_to_ptr.vmem [resolvable:$true] %s61
      %64 = dma.hbm_to_vmem [thread:$0]  %s3, 256, %s62, [#allocation10]
    $region17: #{tpu_custom_call.1} parent=1 // pred_fallthru
      _
    // Predicated region
    $region18: #{tpu_custom_call.1} parent=1 // pred_check
      _
    $region19: #{tpu_custom_call.1} parent=1 // pred_check_branch
      %66 = sbr.rel (0) target = $region21
    $region20: #{tpu_custom_call.1} parent=1 // pred_region
      _
    $region21: #{tpu_custom_call.1} parent=1 // pred_fallthru
      _
    // Predicated region
    $region22: #{tpu_custom_call.1} parent=1 // pred_check
      _
    $region23: #{tpu_custom_call.1} parent=1 // pred_check_branch
      %68 = sbr.rel (0) target = $region25
    $region24: #{tpu_custom_call.1} parent=1 // pred_region
      %s70 = ssub.s32 12288, 12288
      %71 = vsyncadd [#allocation10], %s70
      %s72 = sshll.u32 [#allocation11], 4
      %s73 = int_to_ptr.vmem [resolvable:$true] %s72
      %78 = dma.hbm_to_vmem [thread:$0]  %s5, 12288, %s73, [#allocation10], 192, 192, 12
    $region25: #{tpu_custom_call.1} parent=1 // pred_fallthru
      _
    // Predicated region
    $region26: #{tpu_custom_call.1} parent=1 // pred_check
      _
    $region27: #{tpu_custom_call.1} parent=1 // pred_check_branch
      %80 = sbr.rel (0) target = $region29
    $region28: #{tpu_custom_call.1} parent=1 // pred_region
      _
    $region29: #{tpu_custom_call.1} parent=1 // pred_fallthru
      _
    // Predicated region
    $region30: #{tpu_custom_call.1} parent=1 // pred_check
      _
    $region31: #{tpu_custom_call.1} parent=1 // pred_check_branch
      %82 = sbr.rel (0) target = $region33
    $region32: #{tpu_custom_call.1} parent=1 // pred_region
      %s84 = ssub.s32 6144, 6144
      %85 = vsyncadd [#allocation13], %s84
      %s86 = sshll.u32 [#allocation12], 4
      %s87 = int_to_ptr.vmem [resolvable:$true] %s86
      %92 = dma.hbm_to_vmem [thread:$0]  %s7, 6144, %s87, [#allocation13], 128, 128, 8
    $region33: #{tpu_custom_call.1} parent=1 // pred_fallthru
      _
    // Predicated region
    $region34: #{tpu_custom_call.1} parent=1 // pred_check
      _
    $region35: #{tpu_custom_call.1} parent=1 // pred_check_branch
      %94 = sbr.rel (0) target = $region37
    $region36: #{tpu_custom_call.1} parent=1 // pred_region
      _
    $region37: #{tpu_custom_call.1} parent=1 // pred_fallthru
      _
    // Predicated region
    $region38: #{tpu_custom_call.1} parent=1 // pred_check
      _
    $region39: #{tpu_custom_call.1} parent=1 // pred_check_branch
      %96 = sbr.rel (0) target = $region41
    $region40: #{tpu_custom_call.1} parent=1 // pred_region
      _
    $region41: #{tpu_custom_call.1} parent=1 // pred_fallthru
      _
    // Predicated region
    $region42: #{tpu_custom_call.1} parent=1 // pred_check
      _
    $region43: #{tpu_custom_call.1} parent=1 // pred_check_branch
      %98 = sbr.rel (0) target = $region45
    $region44: #{tpu_custom_call.1} parent=1 // pred_region
      _
    $region45: #{tpu_custom_call.1} parent=1 // pred_fallthru
      _
    // Predicated region
    $region46: #{tpu_custom_call.1} parent=1 // pred_check
      _
    $region47: #{tpu_custom_call.1} parent=1 // pred_check_branch
      %100 = sbr.rel (0) target = $region49
    $region48: #{tpu_custom_call.1} parent=1 // pred_region
      %101 = dma.done [#allocation4], 128
    $region49: #{tpu_custom_call.1} parent=1 // pred_fallthru
      _
    // Predicated region
    $region50: #{tpu_custom_call.1} parent=1 // pred_check
      _
    $region51: #{tpu_custom_call.1} parent=1 // pred_check_branch
      %103 = sbr.rel (0) target = $region53
    $region52: #{tpu_custom_call.1} parent=1 // pred_region
      %104 = dma.done [#allocation7], 128
    $region53: #{tpu_custom_call.1} parent=1 // pred_fallthru
      _
    // Predicated region
    $region54: #{tpu_custom_call.1} parent=1 // pred_check
      _
    $region55: #{tpu_custom_call.1} parent=1 // pred_check_branch
      %106 = sbr.rel (0) target = $region57
    $region56: #{tpu_custom_call.1} parent=1 // pred_region
      %107 = dma.done [#allocation7], 512
    $region57: #{tpu_custom_call.1} parent=1 // pred_fallthru
      _
    // Predicated region
    $region58: #{tpu_custom_call.1} parent=1 // pred_check
      _
    $region59: #{tpu_custom_call.1} parent=1 // pred_check_branch
      %109 = sbr.rel (0) target = $region61
    $region60: #{tpu_custom_call.1} parent=1 // pred_region
      %110 = dma.done [#allocation10], 256
    $region61: #{tpu_custom_call.1} parent=1 // pred_fallthru
      _
    // Predicated region
    $region62: #{tpu_custom_call.1} parent=1 // pred_check
      _
    $region63: #{tpu_custom_call.1} parent=1 // pred_check_branch
      %112 = sbr.rel (0) target = $region65
    $region64: #{tpu_custom_call.1} parent=1 // pred_region
      %113 = dma.done [#allocation10], 12288
    $region65: #{tpu_custom_call.1} parent=1 // pred_fallthru
      _
    // Predicated region
    $region66: #{tpu_custom_call.1} parent=1 // pred_check
      _
    $region67: #{tpu_custom_call.1} parent=1 // pred_check_branch
      %115 = sbr.rel (0) target = $region69
    $region68: #{tpu_custom_call.1} parent=1 // pred_region
      %116 = dma.done [#allocation13], 6144
    $region69: #{tpu_custom_call.1} parent=1 // pred_fallthru
      _
    %v118 = vld [vmem:[#allocation3] sm:$0xff]
    %v119 = vpack.c.bf16 %v118, %v118
    %v120 = vld [vmem:[#allocation8] sm:$0xff]
    %v121 = vld [vmem:[#allocation8 + $0x8] sm:$0xff]
    %v122 = vld [vmem:[#allocation8 + $0x10] sm:$0xff]
    %v123 = vld [vmem:[#allocation8 + $0x18] sm:$0xff]
    %v124 = vld [vmem:[#allocation6] sm:$0xff]
    %v125 = vpack.c.bf16 %v124, %v124
    %v126 = vld [vmem:[#allocation9] sm:$0xff]
    %v127 = vld [vmem:[#allocation9 + $0x8] sm:$0xff]
    %v130 = vunpack.c.l.b16 %v126
    %v131 = vunpack.c.h.b16 %v126
    %v132 = vunpack.c.l.b16 %v127
    %v133 = vunpack.c.h.b16 %v127
    %v134 = vpack.c.b16 %v130, %v130
    %v135 = vpack.c.b16 %v131, %v131
    %v136 = vpack.c.b16 %v132, %v132
    %v137 = vpack.c.b16 %v133, %v133
    %vm138 = vcmask 64512
    %v140 = vsel %vm138, %v125, 0
    %vm142 = vcmask 1043456
    %v144 = vsel %vm142, %v134, 0
    %v147 = vsel %vm142, %v135, 0
    %v150 = vsel %vm142, %v136, 0
    %v153 = vsel %vm142, %v137, 0
    %155 = vmatprep.subr.bf16.mxu0 %v147
    %156 = vmatpush1.bf16.msra.mxu0 %v144
    %157 = vmatprep.subr.bf16.mxu0 0
    %158 = vmatpush1.bf16.msra.mxu0 0
    %159 = vmatprep.subr.bf16.mxu0 0
    %160 = vmatpush1.bf16.msra.mxu0 0
    %161 = vmatprep.subr.bf16.mxu0 0
    %162 = vmatpush1.bf16.msra.mxu0 0
    %163 = vmatprep.subr.bf16.mxu0 0
    %164 = vmatpush1.bf16.msra.mxu0 0
    %165 = vmatprep.subr.bf16.mxu0 0
    %166 = vmatpush1.bf16.msra.mxu0 0
    %167 = vmatprep.subr.bf16.mxu0 0
    %168 = vmatpush1.bf16.msra.mxu0 0
    %169 = vmatprep.subr.bf16.mxu0 0
    %170 = vmatpush1.bf16.msra.mxu0 0
    %171 = vmatprep.subr.bf16.mxu0 0
    %172 = vmatpush1.bf16.msra.mxu0 0
    %173 = vmatprep.subr.bf16.mxu0 0
    %174 = vmatpush1.bf16.msra.mxu0 0
    %175 = vmatprep.subr.bf16.mxu0 0
    %176 = vmatpush1.bf16.msra.mxu0 0
    %177 = vmatprep.subr.bf16.mxu0 0
    %178 = vmatpush1.bf16.msra.mxu0 0
    %179 = vmatprep.subr.bf16.mxu0 0
    %180 = vmatpush1.bf16.msra.mxu0 0
    %181 = vmatprep.subr.bf16.mxu0 0
    %182 = vmatpush1.bf16.msra.mxu0 0
    %183 = vmatprep.subr.bf16.mxu0 0
    %184 = vmatpush1.bf16.msra.mxu0 0
    %185 = vmatprep.subr.bf16.mxu0 0
    %186 = vmatpush1.bf16.msra.mxu0 0
    %187 = vmatprep.mubr.bf16.mxu0 0
    %188 = vmatmul.mubr.bf16.gmra.mrb[0].mxu0 %v140
    %v189 = vpop.f32.mrb[0].mxu0
    %v190 = vadd.f32 0.0, %v189
    %v191 = vpop.f32.mrb[0].mxu0
    %v192 = vadd.f32 0.0, %v191
    %v193 = vpop.f32.mrb[0].mxu0
    %v194 = vpop.f32.mrb[0].mxu0
    %195 = vdwg.mxu0
    %196 = vmatprep.subr.bf16.mxu0 %v153
    %197 = vmatpush1.bf16.msra.mxu0 %v150
    %198 = vmatprep.subr.bf16.mxu0 0
    %199 = vmatpush1.bf16.msra.mxu0 0
    %200 = vmatprep.subr.bf16.mxu0 0
    %201 = vmatpush1.bf16.msra.mxu0 0
    %202 = vmatprep.subr.bf16.mxu0 0
    %203 = vmatpush1.bf16.msra.mxu0 0
    %204 = vmatprep.subr.bf16.mxu0 0
    %205 = vmatpush1.bf16.msra.mxu0 0
    %206 = vmatprep.subr.bf16.mxu0 0
    %207 = vmatpush1.bf16.msra.mxu0 0
    %208 = vmatprep.subr.bf16.mxu0 0
    %209 = vmatpush1.bf16.msra.mxu0 0
    %210 = vmatprep.subr.bf16.mxu0 0
    %211 = vmatpush1.bf16.msra.mxu0 0
    %212 = vmatprep.subr.bf16.mxu0 0
    %213 = vmatpush1.bf16.msra.mxu0 0
    %214 = vmatprep.subr.bf16.mxu0 0
    %215 = vmatpush1.bf16.msra.mxu0 0
    %216 = vmatprep.subr.bf16.mxu0 0
    %217 = vmatpush1.bf16.msra.mxu0 0
    %218 = vmatprep.subr.bf16.mxu0 0
    %219 = vmatpush1.bf16.msra.mxu0 0
    %220 = vmatprep.subr.bf16.mxu0 0
    %221 = vmatpush1.bf16.msra.mxu0 0
    %222 = vmatprep.subr.bf16.mxu0 0
    %223 = vmatpush1.bf16.msra.mxu0 0
    %224 = vmatprep.subr.bf16.mxu0 0
    %225 = vmatpush1.bf16.msra.mxu0 0
    %226 = vmatprep.subr.bf16.mxu0 0
    %227 = vmatpush1.bf16.msra.mxu0 0
    %228 = vmatprep.mubr.bf16.mxu0 0
    %229 = vmatmul.mubr.bf16.gmra.mrb[0].mxu0 %v140
    %v230 = vpop.f32.mrb[0].mxu0
    %v231 = vadd.f32 0.0, %v230
    %v232 = vpop.f32.mrb[0].mxu0
    %v233 = vadd.f32 0.0, %v232
    %v234 = vpop.f32.mrb[0].mxu0
    %v235 = vpop.f32.mrb[0].mxu0
    %236 = vdwg.mxu0
    %v241 = vunpack.c.l.b16 %v120
    %v242 = vunpack.c.h.b16 %v120
    %v243 = vunpack.c.l.b16 %v121
    %v244 = vunpack.c.h.b16 %v121
    %v245 = vunpack.c.l.b16 %v122
    %v246 = vunpack.c.h.b16 %v122
    %v247 = vunpack.c.l.b16 %v123
    %v248 = vunpack.c.h.b16 %v123
    %v249 = vpack.c.b16 %v245, %v241
    %v250 = vpack.c.b16 %v246, %v242
    %v251 = vpack.c.b16 %v247, %v243
    %v252 = vpack.c.b16 %v248, %v244
    %vm257 = vcmask 130048
    %v259 = vsel %vm257, %v119, 0
    %261 = vmatprep.subr.bf16.mxu0 %v250
    %262 = vmatpush1.bf16.msra.mxu0 %v249
    %263 = vmatprep.subr.bf16.mxu0 0
    %264 = vmatpush1.bf16.msra.mxu0 0
    %265 = vmatprep.subr.bf16.mxu0 0
    %266 = vmatpush1.bf16.msra.mxu0 0
    %267 = vmatprep.subr.bf16.mxu0 0
    %268 = vmatpush1.bf16.msra.mxu0 0
    %269 = vmatprep.subr.bf16.mxu0 0
    %270 = vmatpush1.bf16.msra.mxu0 0
    %271 = vmatprep.subr.bf16.mxu0 0
    %272 = vmatpush1.bf16.msra.mxu0 0
    %273 = vmatprep.subr.bf16.mxu0 0
    %274 = vmatpush1.bf16.msra.mxu0 0
    %275 = vmatprep.subr.bf16.mxu0 0
    %276 = vmatpush1.bf16.msra.mxu0 0
    %277 = vmatprep.subr.bf16.mxu0 0
    %278 = vmatpush1.bf16.msra.mxu0 0
    %279 = vmatprep.subr.bf16.mxu0 0
    %280 = vmatpush1.bf16.msra.mxu0 0
    %281 = vmatprep.subr.bf16.mxu0 0
    %282 = vmatpush1.bf16.msra.mxu0 0
    %283 = vmatprep.subr.bf16.mxu0 0
    %284 = vmatpush1.bf16.msra.mxu0 0
    %285 = vmatprep.subr.bf16.mxu0 0
    %286 = vmatpush1.bf16.msra.mxu0 0
    %287 = vmatprep.subr.bf16.mxu0 0
    %288 = vmatpush1.bf16.msra.mxu0 0
    %289 = vmatprep.subr.bf16.mxu0 0
    %290 = vmatpush1.bf16.msra.mxu0 0
    %291 = vmatprep.subr.bf16.mxu0 0
    %292 = vmatpush1.bf16.msra.mxu0 0
    %293 = vmatprep.mubr.bf16.mxu0 0
    %294 = vmatmul.mubr.bf16.gmra.mrb[0].mxu0 %v259
    %v295 = vpop.f32.mrb[0].mxu0
    %v296 = vadd.f32 %v190, %v295
    %v297 = vpop.f32.mrb[0].mxu0
    %v298 = vadd.f32 %v192, %v297
    %v299 = vpop.f32.mrb[0].mxu0
    %v300 = vpop.f32.mrb[0].mxu0
    %301 = vdwg.mxu0
    %302 = vmatprep.subr.bf16.mxu0 %v252
    %303 = vmatpush1.bf16.msra.mxu0 %v251
    %304 = vmatprep.subr.bf16.mxu0 0
    %305 = vmatpush1.bf16.msra.mxu0 0
    %306 = vmatprep.subr.bf16.mxu0 0
    %307 = vmatpush1.bf16.msra.mxu0 0
    %308 = vmatprep.subr.bf16.mxu0 0
    %309 = vmatpush1.bf16.msra.mxu0 0
    %310 = vmatprep.subr.bf16.mxu0 0
    %311 = vmatpush1.bf16.msra.mxu0 0
    %312 = vmatprep.subr.bf16.mxu0 0
    %313 = vmatpush1.bf16.msra.mxu0 0
    %314 = vmatprep.subr.bf16.mxu0 0
    %315 = vmatpush1.bf16.msra.mxu0 0
    %316 = vmatprep.subr.bf16.mxu0 0
    %317 = vmatpush1.bf16.msra.mxu0 0
    %318 = vmatprep.subr.bf16.mxu0 0
    %319 = vmatpush1.bf16.msra.mxu0 0
    %320 = vmatprep.subr.bf16.mxu0 0
    %321 = vmatpush1.bf16.msra.mxu0 0
    %322 = vmatprep.subr.bf16.mxu0 0
    %323 = vmatpush1.bf16.msra.mxu0 0
    %324 = vmatprep.subr.bf16.mxu0 0
    %325 = vmatpush1.bf16.msra.mxu0 0
    %326 = vmatprep.subr.bf16.mxu0 0
    %327 = vmatpush1.bf16.msra.mxu0 0
    %328 = vmatprep.subr.bf16.mxu0 0
    %329 = vmatpush1.bf16.msra.mxu0 0
    %330 = vmatprep.subr.bf16.mxu0 0
    %331 = vmatpush1.bf16.msra.mxu0 0
    %332 = vmatprep.subr.bf16.mxu0 0
    %333 = vmatpush1.bf16.msra.mxu0 0
    %334 = vmatprep.mubr.bf16.mxu0 0
    %335 = vmatmul.mubr.bf16.gmra.mrb[0].mxu0 %v259
    %v336 = vpop.f32.mrb[0].mxu0
    %v337 = vadd.f32 %v231, %v336
    %v338 = vpop.f32.mrb[0].mxu0
    %v339 = vadd.f32 %v233, %v338
    %v340 = vpop.f32.mrb[0].mxu0
    %v341 = vpop.f32.mrb[0].mxu0
    %342 = vdwg.mxu0
    %v343 = vld [vmem:[%s4] sm:$0xf]
    %v345 = vlaneseq
    %v346 = vshrl.u32 %v345, 7
    %v347 = vsub.s32 0, %v346
    %v348 = vrot.slane %v343, %v347
    %v349 = vlaneseq
    %v350 = vshrl.u32 %v349, 7
    %v351 = vsub.s32 1, %v350
    %v352 = vrot.slane %v343, %v351
    %v353 = vlaneseq
    %v354 = vshrl.u32 %v353, 7
    %v355 = vsub.s32 2, %v354
    %v356 = vrot.slane %v343, %v355
    %v357 = vlaneseq
    %v358 = vshrl.u32 %v357, 7
    %v359 = vsub.s32 3, %v358
    %v360 = vrot.slane %v343, %v359
    %v365 = vadd.f32 %v296, %v348
    %v366 = vadd.f32 %v298, %v352
    %v367 = vadd.f32 %v337, %v356
    %v368 = vadd.f32 %v339, %v360
    %v369 = vmax.f32 %v365, 0.0
    %v370 = vmax.f32 %v366, 0.0
    %v371 = vmax.f32 %v367, 0.0
    %v372 = vmax.f32 %v368, 0.0
    %v373 = vpack.c.bf16 %v369, %v369
    %v374 = vpack.c.bf16 %v370, %v370
    %v375 = vpack.c.bf16 %v371, %v371
    %v376 = vpack.c.bf16 %v372, %v372
    %v377 = vld [vmem:[#allocation11] sm:$0xff]
    %v378 = vld [vmem:[#allocation11 + $0x8] sm:$0xf]
    %v379 = vld [vmem:[#allocation11 + $0xc] sm:$0xff]
    %v380 = vld [vmem:[#allocation11 + $0x14] sm:$0xf]
    %v381 = vld [vmem:[#allocation11 + $0x18] sm:$0xff]
    %v382 = vld [vmem:[#allocation11 + $0x20] sm:$0xf]
    %v383 = vld [vmem:[#allocation11 + $0x24] sm:$0xff]
    %v384 = vld [vmem:[#allocation11 + $0x2c] sm:$0xf]
    %v385 = vld [vmem:[#allocation11 + $0x30] sm:$0xff]
    %v386 = vld [vmem:[#allocation11 + $0x38] sm:$0xf]
    %v387 = vld [vmem:[#allocation11 + $0x3c] sm:$0xff]
    %v388 = vld [vmem:[#allocation11 + $0x44] sm:$0xf]
    %v389 = vld [vmem:[#allocation11 + $0x48] sm:$0xff]
    %v390 = vld [vmem:[#allocation11 + $0x50] sm:$0xf]
    %v391 = vld [vmem:[#allocation11 + $0x54] sm:$0xff]
    %v392 = vld [vmem:[#allocation11 + $0x5c] sm:$0xf]
    %v393 = vld [vmem:[#allocation11 + $0x60] sm:$0xff]
    %v394 = vld [vmem:[#allocation11 + $0x68] sm:$0xf]
    %v395 = vld [vmem:[#allocation11 + $0x6c] sm:$0xff]
    %v396 = vld [vmem:[#allocation11 + $0x74] sm:$0xf]
    %v397 = vld [vmem:[#allocation11 + $0x78] sm:$0xff]
    %v398 = vld [vmem:[#allocation11 + $0x80] sm:$0xf]
    %v399 = vld [vmem:[#allocation11 + $0x84] sm:$0xff]
    %v400 = vld [vmem:[#allocation11 + $0x8c] sm:$0xf]
    %v401 = vld [vmem:[#allocation11 + $0x90] sm:$0xff]
    %v402 = vld [vmem:[#allocation11 + $0x98] sm:$0xf]
    %v403 = vld [vmem:[#allocation11 + $0x9c] sm:$0xff]
    %v404 = vld [vmem:[#allocation11 + $0xa4] sm:$0xf]
    %v405 = vld [vmem:[#allocation11 + $0xa8] sm:$0xff]
    %v406 = vld [vmem:[#allocation11 + $0xb0] sm:$0xf]
    %v407 = vld [vmem:[#allocation11 + $0xb4] sm:$0xff]
    %v408 = vld [vmem:[#allocation11 + $0xbc] sm:$0xf]
    %v409 = vld [vmem:[#allocation11 + $0xc0] sm:$0xff]
    %v410 = vld [vmem:[#allocation11 + $0xc8] sm:$0xf]
    %v411 = vld [vmem:[#allocation11 + $0xcc] sm:$0xff]
    %v412 = vld [vmem:[#allocation11 + $0xd4] sm:$0xf]
    %v413 = vld [vmem:[#allocation11 + $0xd8] sm:$0xff]
    %v414 = vld [vmem:[#allocation11 + $0xe0] sm:$0xf]
    %v415 = vld [vmem:[#allocation11 + $0xe4] sm:$0xff]
    %v416 = vld [vmem:[#allocation11 + $0xec] sm:$0xf]
    %v417 = vld [vmem:[#allocation11 + $0xf0] sm:$0xff]
    %v418 = vld [vmem:[#allocation11 + $0xf8] sm:$0xf]
    %v419 = vld [vmem:[#allocation11 + $0xfc] sm:$0xff]
    %v420 = vld [vmem:[#allocation11 + $0x104] sm:$0xf]
    %v421 = vld [vmem:[#allocation11 + $0x108] sm:$0xff]
    %v422 = vld [vmem:[#allocation11 + $0x110] sm:$0xf]
    %v423 = vld [vmem:[#allocation11 + $0x114] sm:$0xff]
    %v424 = vld [vmem:[#allocation11 + $0x11c] sm:$0xf]
    %v425 = vld [vmem:[#allocation11 + $0x120] sm:$0xff]
    %v426 = vld [vmem:[#allocation11 + $0x128] sm:$0xf]
    %v427 = vld [vmem:[#allocation11 + $0x12c] sm:$0xff]
    %v428 = vld [vmem:[#allocation11 + $0x134] sm:$0xf]
    %v429 = vld [vmem:[#allocation11 + $0x138] sm:$0xff]
    %v430 = vld [vmem:[#allocation11 + $0x140] sm:$0xf]
    %v431 = vld [vmem:[#allocation11 + $0x144] sm:$0xff]
    %v432 = vld [vmem:[#allocation11 + $0x14c] sm:$0xf]
    %v433 = vld [vmem:[#allocation11 + $0x150] sm:$0xff]
    %v434 = vld [vmem:[#allocation11 + $0x158] sm:$0xf]
    %v435 = vld [vmem:[#allocation11 + $0x15c] sm:$0xff]
    %v436 = vld [vmem:[#allocation11 + $0x164] sm:$0xf]
    %v437 = vld [vmem:[#allocation11 + $0x168] sm:$0xff]
    %v438 = vld [vmem:[#allocation11 + $0x170] sm:$0xf]
    %v439 = vld [vmem:[#allocation11 + $0x174] sm:$0xff]
    %v440 = vld [vmem:[#allocation11 + $0x17c] sm:$0xf]
    %v441 = vld [vmem:[#allocation11 + $0x180] sm:$0xff]
    %v442 = vld [vmem:[#allocation11 + $0x188] sm:$0xf]
    %v443 = vld [vmem:[#allocation11 + $0x18c] sm:$0xff]
    %v444 = vld [vmem:[#allocation11 + $0x194] sm:$0xf]
    %v445 = vld [vmem:[#allocation11 + $0x198] sm:$0xff]
    %v446 = vld [vmem:[#allocation11 + $0x1a0] sm:$0xf]
    %v447 = vld [vmem:[#allocation11 + $0x1a4] sm:$0xff]
    %v448 = vld [vmem:[#allocation11 + $0x1ac] sm:$0xf]
    %v449 = vld [vmem:[#allocation11 + $0x1b0] sm:$0xff]
    %v450 = vld [vmem:[#allocation11 + $0x1b8] sm:$0xf]
    %v451 = vld [vmem:[#allocation11 + $0x1bc] sm:$0xff]
    %v452 = vld [vmem:[#allocation11 + $0x1c4] sm:$0xf]
    %v453 = vld [vmem:[#allocation11 + $0x1c8] sm:$0xff]
    %v454 = vld [vmem:[#allocation11 + $0x1d0] sm:$0xf]
    %v455 = vld [vmem:[#allocation11 + $0x1d4] sm:$0xff]
    %v456 = vld [vmem:[#allocation11 + $0x1dc] sm:$0xf]
    %v457 = vld [vmem:[#allocation11 + $0x1e0] sm:$0xff]
    %v458 = vld [vmem:[#allocation11 + $0x1e8] sm:$0xf]
    %v459 = vld [vmem:[#allocation11 + $0x1ec] sm:$0xff]
    %v460 = vld [vmem:[#allocation11 + $0x1f4] sm:$0xf]
    %v461 = vld [vmem:[#allocation11 + $0x1f8] sm:$0xff]
    %v462 = vld [vmem:[#allocation11 + $0x200] sm:$0xf]
    %v463 = vld [vmem:[#allocation11 + $0x204] sm:$0xff]
    %v464 = vld [vmem:[#allocation11 + $0x20c] sm:$0xf]
    %v465 = vld [vmem:[#allocation11 + $0x210] sm:$0xff]
    %v466 = vld [vmem:[#allocation11 + $0x218] sm:$0xf]
    %v467 = vld [vmem:[#allocation11 + $0x21c] sm:$0xff]
    %v468 = vld [vmem:[#allocation11 + $0x224] sm:$0xf]
    %v469 = vld [vmem:[#allocation11 + $0x228] sm:$0xff]
    %v470 = vld [vmem:[#allocation11 + $0x230] sm:$0xf]
    %v471 = vld [vmem:[#allocation11 + $0x234] sm:$0xff]
    %v472 = vld [vmem:[#allocation11 + $0x23c] sm:$0xf]
    %v473 = vld [vmem:[#allocation11 + $0x240] sm:$0xff]
    %v474 = vld [vmem:[#allocation11 + $0x248] sm:$0xf]
    %v475 = vld [vmem:[#allocation11 + $0x24c] sm:$0xff]
    %v476 = vld [vmem:[#allocation11 + $0x254] sm:$0xf]
    %v477 = vld [vmem:[#allocation11 + $0x258] sm:$0xff]
    %v478 = vld [vmem:[#allocation11 + $0x260] sm:$0xf]
    %v479 = vld [vmem:[#allocation11 + $0x264] sm:$0xff]
    %v480 = vld [vmem:[#allocation11 + $0x26c] sm:$0xf]
    %v481 = vld [vmem:[#allocation11 + $0x270] sm:$0xff]
    %v482 = vld [vmem:[#allocation11 + $0x278] sm:$0xf]
    %v483 = vld [vmem:[#allocation11 + $0x27c] sm:$0xff]
    %v484 = vld [vmem:[#allocation11 + $0x284] sm:$0xf]
    %v485 = vld [vmem:[#allocation11 + $0x288] sm:$0xff]
    %v486 = vld [vmem:[#allocation11 + $0x290] sm:$0xf]
    %v487 = vld [vmem:[#allocation11 + $0x294] sm:$0xff]
    %v488 = vld [vmem:[#allocation11 + $0x29c] sm:$0xf]
    %v489 = vld [vmem:[#allocation11 + $0x2a0] sm:$0xff]
    %v490 = vld [vmem:[#allocation11 + $0x2a8] sm:$0xf]
    %v491 = vld [vmem:[#allocation11 + $0x2ac] sm:$0xff]
    %v492 = vld [vmem:[#allocation11 + $0x2b4] sm:$0xf]
    %v493 = vld [vmem:[#allocation11 + $0x2b8] sm:$0xff]
    %v494 = vld [vmem:[#allocation11 + $0x2c0] sm:$0xf]
    %v495 = vld [vmem:[#allocation11 + $0x2c4] sm:$0xff]
    %v496 = vld [vmem:[#allocation11 + $0x2cc] sm:$0xf]
    %v497 = vld [vmem:[#allocation11 + $0x2d0] sm:$0xff]
    %v498 = vld [vmem:[#allocation11 + $0x2d8] sm:$0xf]
    %v499 = vld [vmem:[#allocation11 + $0x2dc] sm:$0xff]
    %v500 = vld [vmem:[#allocation11 + $0x2e4] sm:$0xf]
    %v501 = vld [vmem:[#allocation11 + $0x2e8] sm:$0xff]
    %v502 = vld [vmem:[#allocation11 + $0x2f0] sm:$0xf]
    %v503 = vld [vmem:[#allocation11 + $0x2f4] sm:$0xff]
    %v504 = vld [vmem:[#allocation11 + $0x2fc] sm:$0xf]
    %v505 = vld [vmem:[%s6] sm:$0x7]
    %v507 = vlaneseq
    %v508 = vshrl.u32 %v507, 7
    %v509 = vsub.s32 0, %v508
    %v510 = vrot.slane %v505, %v509
    %v511 = vlaneseq
    %v512 = vshrl.u32 %v511, 7
    %v513 = vsub.s32 1, %v512
    %v514 = vrot.slane %v505, %v513
    %v515 = vlaneseq
    %v516 = vshrl.u32 %v515, 7
    %v517 = vsub.s32 2, %v516
    %v518 = vrot.slane %v505, %v517
    %v650 = vunpack.c.l.b16 %v377
    %v651 = vunpack.c.h.b16 %v377
    %v652 = vunpack.c.l.b16 %v378
    %v653 = vunpack.c.l.b16 %v379
    %v654 = vunpack.c.h.b16 %v379
    %v655 = vunpack.c.l.b16 %v380
    %v656 = vunpack.c.l.b16 %v381
    %v657 = vunpack.c.h.b16 %v381
    %v658 = vunpack.c.l.b16 %v382
    %v659 = vunpack.c.l.b16 %v383
    %v660 = vunpack.c.h.b16 %v383
    %v661 = vunpack.c.l.b16 %v384
    %v662 = vunpack.c.l.b16 %v385
    %v663 = vunpack.c.h.b16 %v385
    %v664 = vunpack.c.l.b16 %v386
    %v665 = vunpack.c.l.b16 %v387
    %v666 = vunpack.c.h.b16 %v387
    %v667 = vunpack.c.l.b16 %v388
    %v668 = vunpack.c.l.b16 %v389
    %v669 = vunpack.c.h.b16 %v389
    %v670 = vunpack.c.l.b16 %v390
    %v671 = vunpack.c.l.b16 %v391
    %v672 = vunpack.c.h.b16 %v391
    %v673 = vunpack.c.l.b16 %v392
    %v674 = vunpack.c.l.b16 %v393
    %v675 = vunpack.c.h.b16 %v393
    %v676 = vunpack.c.l.b16 %v394
    %v677 = vunpack.c.l.b16 %v395
    %v678 = vunpack.c.h.b16 %v395
    %v679 = vunpack.c.l.b16 %v396
    %v680 = vunpack.c.l.b16 %v397
    %v681 = vunpack.c.h.b16 %v397
    %v682 = vunpack.c.l.b16 %v398
    %v683 = vunpack.c.l.b16 %v399
    %v684 = vunpack.c.h.b16 %v399
    %v685 = vunpack.c.l.b16 %v400
    %v686 = vunpack.c.l.b16 %v401
    %v687 = vunpack.c.h.b16 %v401
    %v688 = vunpack.c.l.b16 %v402
    %v689 = vunpack.c.l.b16 %v403
    %v690 = vunpack.c.h.b16 %v403
    %v691 = vunpack.c.l.b16 %v404
    %v692 = vunpack.c.l.b16 %v405
    %v693 = vunpack.c.h.b16 %v405
    %v694 = vunpack.c.l.b16 %v406
    %v695 = vunpack.c.l.b16 %v407
    %v696 = vunpack.c.h.b16 %v407
    %v697 = vunpack.c.l.b16 %v408
    %v698 = vunpack.c.l.b16 %v409
    %v699 = vunpack.c.h.b16 %v409
    %v700 = vunpack.c.l.b16 %v410
    %v701 = vunpack.c.l.b16 %v411
    %v702 = vunpack.c.h.b16 %v411
    %v703 = vunpack.c.l.b16 %v412
    %v704 = vunpack.c.l.b16 %v413
    %v705 = vunpack.c.h.b16 %v413
    %v706 = vunpack.c.l.b16 %v414
    %v707 = vunpack.c.l.b16 %v415
    %v708 = vunpack.c.h.b16 %v415
    %v709 = vunpack.c.l.b16 %v416
    %v710 = vunpack.c.l.b16 %v417
    %v711 = vunpack.c.h.b16 %v417
    %v712 = vunpack.c.l.b16 %v418
    %v713 = vunpack.c.l.b16 %v419
    %v714 = vunpack.c.h.b16 %v419
    %v715 = vunpack.c.l.b16 %v420
    %v716 = vunpack.c.l.b16 %v421
    %v717 = vunpack.c.h.b16 %v421
    %v718 = vunpack.c.l.b16 %v422
    %v719 = vunpack.c.l.b16 %v423
    %v720 = vunpack.c.h.b16 %v423
    %v721 = vunpack.c.l.b16 %v424
    %v722 = vunpack.c.l.b16 %v425
    %v723 = vunpack.c.h.b16 %v425
    %v724 = vunpack.c.l.b16 %v426
    %v725 = vunpack.c.l.b16 %v427
    %v726 = vunpack.c.h.b16 %v427
    %v727 = vunpack.c.l.b16 %v428
    %v728 = vunpack.c.l.b16 %v429
    %v729 = vunpack.c.h.b16 %v429
    %v730 = vunpack.c.l.b16 %v430
    %v731 = vunpack.c.l.b16 %v431
    %v732 = vunpack.c.h.b16 %v431
    %v733 = vunpack.c.l.b16 %v432
    %v734 = vunpack.c.l.b16 %v433
    %v735 = vunpack.c.h.b16 %v433
    %v736 = vunpack.c.l.b16 %v434
    %v737 = vunpack.c.l.b16 %v435
    %v738 = vunpack.c.h.b16 %v435
    %v739 = vunpack.c.l.b16 %v436
    %v740 = vunpack.c.l.b16 %v437
    %v741 = vunpack.c.h.b16 %v437
    %v742 = vunpack.c.l.b16 %v438
    %v743 = vunpack.c.l.b16 %v439
    %v744 = vunpack.c.h.b16 %v439
    %v745 = vunpack.c.l.b16 %v440
    %v746 = vunpack.c.l.b16 %v441
    %v747 = vunpack.c.h.b16 %v441
    %v748 = vunpack.c.l.b16 %v442
    %v749 = vunpack.c.l.b16 %v443
    %v750 = vunpack.c.h.b16 %v443
    %v751 = vunpack.c.l.b16 %v444
    %v752 = vunpack.c.l.b16 %v445
    %v753 = vunpack.c.h.b16 %v445
    %v754 = vunpack.c.l.b16 %v446
    %v755 = vunpack.c.l.b16 %v447
    %v756 = vunpack.c.h.b16 %v447
    %v757 = vunpack.c.l.b16 %v448
    %v758 = vunpack.c.l.b16 %v449
    %v759 = vunpack.c.h.b16 %v449
    %v760 = vunpack.c.l.b16 %v450
    %v761 = vunpack.c.l.b16 %v451
    %v762 = vunpack.c.h.b16 %v451
    %v763 = vunpack.c.l.b16 %v452
    %v764 = vunpack.c.l.b16 %v453
    %v765 = vunpack.c.h.b16 %v453
    %v766 = vunpack.c.l.b16 %v454
    %v767 = vunpack.c.l.b16 %v455
    %v768 = vunpack.c.h.b16 %v455
    %v769 = vunpack.c.l.b16 %v456
    %v770 = vunpack.c.l.b16 %v457
    %v771 = vunpack.c.h.b16 %v457
    %v772 = vunpack.c.l.b16 %v458
    %v773 = vunpack.c.l.b16 %v459
    %v774 = vunpack.c.h.b16 %v459
    %v775 = vunpack.c.l.b16 %v460
    %v776 = vunpack.c.l.b16 %v461
    %v777 = vunpack.c.h.b16 %v461
    %v778 = vunpack.c.l.b16 %v462
    %v779 = vunpack.c.l.b16 %v463
    %v780 = vunpack.c.h.b16 %v463
    %v781 = vunpack.c.l.b16 %v464
    %v782 = vunpack.c.l.b16 %v465
    %v783 = vunpack.c.h.b16 %v465
    %v784 = vunpack.c.l.b16 %v466
    %v785 = vunpack.c.l.b16 %v467
    %v786 = vunpack.c.h.b16 %v467
    %v787 = vunpack.c.l.b16 %v468
    %v788 = vunpack.c.l.b16 %v469
    %v789 = vunpack.c.h.b16 %v469
    %v790 = vunpack.c.l.b16 %v470
    %v791 = vunpack.c.l.b16 %v471
    %v792 = vunpack.c.h.b16 %v471
    %v793 = vunpack.c.l.b16 %v472
    %v794 = vunpack.c.l.b16 %v473
    %v795 = vunpack.c.h.b16 %v473
    %v796 = vunpack.c.l.b16 %v474
    %v797 = vunpack.c.l.b16 %v475
    %v798 = vunpack.c.h.b16 %v475
    %v799 = vunpack.c.l.b16 %v476
    %v800 = vunpack.c.l.b16 %v477
    %v801 = vunpack.c.h.b16 %v477
    %v802 = vunpack.c.l.b16 %v478
    %v803 = vunpack.c.l.b16 %v479
    %v804 = vunpack.c.h.b16 %v479
    %v805 = vunpack.c.l.b16 %v480
    %v806 = vunpack.c.l.b16 %v481
    %v807 = vunpack.c.h.b16 %v481
    %v808 = vunpack.c.l.b16 %v482
    %v809 = vunpack.c.l.b16 %v483
    %v810 = vunpack.c.h.b16 %v483
    %v811 = vunpack.c.l.b16 %v484
    %v812 = vunpack.c.l.b16 %v485
    %v813 = vunpack.c.h.b16 %v485
    %v814 = vunpack.c.l.b16 %v486
    %v815 = vunpack.c.l.b16 %v487
    %v816 = vunpack.c.h.b16 %v487
    %v817 = vunpack.c.l.b16 %v488
    %v818 = vunpack.c.l.b16 %v489
    %v819 = vunpack.c.h.b16 %v489
    %v820 = vunpack.c.l.b16 %v490
    %v821 = vunpack.c.l.b16 %v491
    %v822 = vunpack.c.h.b16 %v491
    %v823 = vunpack.c.l.b16 %v492
    %v824 = vunpack.c.l.b16 %v493
    %v825 = vunpack.c.h.b16 %v493
    %v826 = vunpack.c.l.b16 %v494
    %v827 = vunpack.c.l.b16 %v495
    %v828 = vunpack.c.h.b16 %v495
    %v829 = vunpack.c.l.b16 %v496
    %v830 = vunpack.c.l.b16 %v497
    %v831 = vunpack.c.h.b16 %v497
    %v832 = vunpack.c.l.b16 %v498
    %v833 = vunpack.c.l.b16 %v499
    %v834 = vunpack.c.h.b16 %v499
    %v835 = vunpack.c.l.b16 %v500
    %v836 = vunpack.c.l.b16 %v501
    %v837 = vunpack.c.h.b16 %v501
    %v838 = vunpack.c.l.b16 %v502
    %v839 = vunpack.c.l.b16 %v503
    %v840 = vunpack.c.h.b16 %v503
    %v841 = vunpack.c.l.b16 %v504
    %v842 = vpack.c.b16 %v653, %v650
    %v843 = vpack.c.b16 %v654, %v651
    %v844 = vpack.c.b16 %v655, %v652
    %v845 = vpack.c.b16 %v659, %v656
    %v846 = vpack.c.b16 %v660, %v657
    %v847 = vpack.c.b16 %v661, %v658
    %v848 = vpack.c.b16 %v665, %v662
    %v849 = vpack.c.b16 %v666, %v663
    %v850 = vpack.c.b16 %v667, %v664
    %v851 = vpack.c.b16 %v671, %v668
    %v852 = vpack.c.b16 %v672, %v669
    %v853 = vpack.c.b16 %v673, %v670
    %v854 = vpack.c.b16 %v677, %v674
    %v855 = vpack.c.b16 %v678, %v675
    %v856 = vpack.c.b16 %v679, %v676
    %v857 = vpack.c.b16 %v683, %v680
    %v858 = vpack.c.b16 %v684, %v681
    %v859 = vpack.c.b16 %v685, %v682
    %v860 = vpack.c.b16 %v689, %v686
    %v861 = vpack.c.b16 %v690, %v687
    %v862 = vpack.c.b16 %v691, %v688
    %v863 = vpack.c.b16 %v695, %v692
    %v864 = vpack.c.b16 %v696, %v693
    %v865 = vpack.c.b16 %v697, %v694
    %v866 = vpack.c.b16 %v701, %v698
    %v867 = vpack.c.b16 %v702, %v699
    %v868 = vpack.c.b16 %v703, %v700
    %v869 = vpack.c.b16 %v707, %v704
    %v870 = vpack.c.b16 %v708, %v705
    %v871 = vpack.c.b16 %v709, %v706
    %v872 = vpack.c.b16 %v713, %v710
    %v873 = vpack.c.b16 %v714, %v711
    %v874 = vpack.c.b16 %v715, %v712
    %v875 = vpack.c.b16 %v719, %v716
    %v876 = vpack.c.b16 %v720, %v717
    %v877 = vpack.c.b16 %v721, %v718
    %v878 = vpack.c.b16 %v725, %v722
    %v879 = vpack.c.b16 %v726, %v723
    %v880 = vpack.c.b16 %v727, %v724
    %v881 = vpack.c.b16 %v731, %v728
    %v882 = vpack.c.b16 %v732, %v729
    %v883 = vpack.c.b16 %v733, %v730
    %v884 = vpack.c.b16 %v737, %v734
    %v885 = vpack.c.b16 %v738, %v735
    %v886 = vpack.c.b16 %v739, %v736
    %v887 = vpack.c.b16 %v743, %v740
    %v888 = vpack.c.b16 %v744, %v741
    %v889 = vpack.c.b16 %v745, %v742
    %v890 = vpack.c.b16 %v749, %v746
    %v891 = vpack.c.b16 %v750, %v747
    %v892 = vpack.c.b16 %v751, %v748
    %v893 = vpack.c.b16 %v755, %v752
    %v894 = vpack.c.b16 %v756, %v753
    %v895 = vpack.c.b16 %v757, %v754
    %v896 = vpack.c.b16 %v761, %v758
    %v897 = vpack.c.b16 %v762, %v759
    %v898 = vpack.c.b16 %v763, %v760
    %v899 = vpack.c.b16 %v767, %v764
    %v900 = vpack.c.b16 %v768, %v765
    %v901 = vpack.c.b16 %v769, %v766
    %v902 = vpack.c.b16 %v773, %v770
    %v903 = vpack.c.b16 %v774, %v771
    %v904 = vpack.c.b16 %v775, %v772
    %v905 = vpack.c.b16 %v779, %v776
    %v906 = vpack.c.b16 %v780, %v777
    %v907 = vpack.c.b16 %v781, %v778
    %v908 = vpack.c.b16 %v785, %v782
    %v909 = vpack.c.b16 %v786, %v783
    %v910 = vpack.c.b16 %v787, %v784
    %v911 = vpack.c.b16 %v791, %v788
    %v912 = vpack.c.b16 %v792, %v789
    %v913 = vpack.c.b16 %v793, %v790
    %v914 = vpack.c.b16 %v797, %v794
    %v915 = vpack.c.b16 %v798, %v795
    %v916 = vpack.c.b16 %v799, %v796
    %v917 = vpack.c.b16 %v803, %v800
    %v918 = vpack.c.b16 %v804, %v801
    %v919 = vpack.c.b16 %v805, %v802
    %v920 = vpack.c.b16 %v809, %v806
    %v921 = vpack.c.b16 %v810, %v807
    %v922 = vpack.c.b16 %v811, %v808
    %v923 = vpack.c.b16 %v815, %v812
    %v924 = vpack.c.b16 %v816, %v813
    %v925 = vpack.c.b16 %v817, %v814
    %v926 = vpack.c.b16 %v821, %v818
    %v927 = vpack.c.b16 %v822, %v819
    %v928 = vpack.c.b16 %v823, %v820
    %v929 = vpack.c.b16 %v827, %v824
    %v930 = vpack.c.b16 %v828, %v825
    %v931 = vpack.c.b16 %v829, %v826
    %v932 = vpack.c.b16 %v833, %v830
    %v933 = vpack.c.b16 %v834, %v831
    %v934 = vpack.c.b16 %v835, %v832
    %v935 = vpack.c.b16 %v839, %v836
    %v936 = vpack.c.b16 %v840, %v837
    %v937 = vpack.c.b16 %v841, %v838
    %1034 = vmatprep.subr.bf16.mxu0 %v843
    %1035 = vmatpush1.bf16.msra.mxu0 %v842
    %1036 = vmatprep.subr.bf16.mxu0 %v846
    %1037 = vmatpush1.bf16.msra.mxu0 %v845
    %1038 = vmatprep.subr.bf16.mxu0 %v849
    %1039 = vmatpush1.bf16.msra.mxu0 %v848
    %1040 = vmatprep.subr.bf16.mxu0 %v852
    %1041 = vmatpush1.bf16.msra.mxu0 %v851
    %1042 = vmatprep.subr.bf16.mxu0 %v855
    %1043 = vmatpush1.bf16.msra.mxu0 %v854
    %1044 = vmatprep.subr.bf16.mxu0 %v858
    %1045 = vmatpush1.bf16.msra.mxu0 %v857
    %1046 = vmatprep.subr.bf16.mxu0 %v861
    %1047 = vmatpush1.bf16.msra.mxu0 %v860
    %1048 = vmatprep.subr.bf16.mxu0 %v864
    %1049 = vmatpush1.bf16.msra.mxu0 %v863
    %1050 = vmatprep.subr.bf16.mxu0 %v867
    %1051 = vmatpush1.bf16.msra.mxu0 %v866
    %1052 = vmatprep.subr.bf16.mxu0 %v870
    %1053 = vmatpush1.bf16.msra.mxu0 %v869
    %1054 = vmatprep.subr.bf16.mxu0 %v873
    %1055 = vmatpush1.bf16.msra.mxu0 %v872
    %1056 = vmatprep.subr.bf16.mxu0 %v876
    %1057 = vmatpush1.bf16.msra.mxu0 %v875
    %1058 = vmatprep.subr.bf16.mxu0 %v879
    %1059 = vmatpush1.bf16.msra.mxu0 %v878
    %1060 = vmatprep.subr.bf16.mxu0 %v882
    %1061 = vmatpush1.bf16.msra.mxu0 %v881
    %1062 = vmatprep.subr.bf16.mxu0 %v885
    %1063 = vmatpush1.bf16.msra.mxu0 %v884
    %1064 = vmatprep.subr.bf16.mxu0 %v888
    %1065 = vmatpush1.bf16.msra.mxu0 %v887
    %1066 = vmatprep.mubr.bf16.mxu0 %v374
    %1067 = vmatmul.mubr.bf16.gmra.mrb[0].mxu0 %v373
    %v1068 = vpop.f32.mrb[0].mxu0
    %v1069 = vadd.f32 %v510, %v1068
    %v1070 = vpop.f32.mrb[0].mxu0
    %v1071 = vadd.f32 %v514, %v1070
    %v1072 = vpop.f32.mrb[0].mxu0
    %v1073 = vpop.f32.mrb[0].mxu0
    %1074 = vdwg.mxu0
    %1075 = vmatprep.subr.bf16.mxu0 %v891
    %1076 = vmatpush1.bf16.msra.mxu0 %v890
    %1077 = vmatprep.subr.bf16.mxu0 %v894
    %1078 = vmatpush1.bf16.msra.mxu0 %v893
    %1079 = vmatprep.subr.bf16.mxu0 %v897
    %1080 = vmatpush1.bf16.msra.mxu0 %v896
    %1081 = vmatprep.subr.bf16.mxu0 %v900
    %1082 = vmatpush1.bf16.msra.mxu0 %v899
    %1083 = vmatprep.subr.bf16.mxu0 %v903
    %1084 = vmatpush1.bf16.msra.mxu0 %v902
    %1085 = vmatprep.subr.bf16.mxu0 %v906
    %1086 = vmatpush1.bf16.msra.mxu0 %v905
    %1087 = vmatprep.subr.bf16.mxu0 %v909
    %1088 = vmatpush1.bf16.msra.mxu0 %v908
    %1089 = vmatprep.subr.bf16.mxu0 %v912
    %1090 = vmatpush1.bf16.msra.mxu0 %v911
    %1091 = vmatprep.subr.bf16.mxu0 %v915
    %1092 = vmatpush1.bf16.msra.mxu0 %v914
    %1093 = vmatprep.subr.bf16.mxu0 %v918
    %1094 = vmatpush1.bf16.msra.mxu0 %v917
    %1095 = vmatprep.subr.bf16.mxu0 %v921
    %1096 = vmatpush1.bf16.msra.mxu0 %v920
    %1097 = vmatprep.subr.bf16.mxu0 %v924
    %1098 = vmatpush1.bf16.msra.mxu0 %v923
    %1099 = vmatprep.subr.bf16.mxu0 %v927
    %1100 = vmatpush1.bf16.msra.mxu0 %v926
    %1101 = vmatprep.subr.bf16.mxu0 %v930
    %1102 = vmatpush1.bf16.msra.mxu0 %v929
    %1103 = vmatprep.subr.bf16.mxu0 %v933
    %1104 = vmatpush1.bf16.msra.mxu0 %v932
    %1105 = vmatprep.subr.bf16.mxu0 %v936
    %1106 = vmatpush1.bf16.msra.mxu0 %v935
    %1107 = vmatprep.mubr.bf16.mxu0 %v376
    %1108 = vmatmul.mubr.bf16.gmra.mrb[0].mxu0 %v375
    %v1109 = vpop.f32.mrb[0].mxu0
    %v1110 = vadd.f32 %v1069, %v1109
    %v1111 = vpop.f32.mrb[0].mxu0
    %v1112 = vadd.f32 %v1071, %v1111
    %v1113 = vpop.f32.mrb[0].mxu0
    %v1114 = vpop.f32.mrb[0].mxu0
    %1115 = vdwg.mxu0
    %1116 = vmatprep.subr.bf16.mxu0 0
    %1117 = vmatpush1.bf16.msra.mxu0 %v844
    %1118 = vmatprep.subr.bf16.mxu0 0
    %1119 = vmatpush1.bf16.msra.mxu0 %v847
    %1120 = vmatprep.subr.bf16.mxu0 0
    %1121 = vmatpush1.bf16.msra.mxu0 %v850
    %1122 = vmatprep.subr.bf16.mxu0 0
    %1123 = vmatpush1.bf16.msra.mxu0 %v853
    %1124 = vmatprep.subr.bf16.mxu0 0
    %1125 = vmatpush1.bf16.msra.mxu0 %v856
    %1126 = vmatprep.subr.bf16.mxu0 0
    %1127 = vmatpush1.bf16.msra.mxu0 %v859
    %1128 = vmatprep.subr.bf16.mxu0 0
    %1129 = vmatpush1.bf16.msra.mxu0 %v862
    %1130 = vmatprep.subr.bf16.mxu0 0
    %1131 = vmatpush1.bf16.msra.mxu0 %v865
    %1132 = vmatprep.subr.bf16.mxu0 0
    %1133 = vmatpush1.bf16.msra.mxu0 %v868
    %1134 = vmatprep.subr.bf16.mxu0 0
    %1135 = vmatpush1.bf16.msra.mxu0 %v871
    %1136 = vmatprep.subr.bf16.mxu0 0
    %1137 = vmatpush1.bf16.msra.mxu0 %v874
    %1138 = vmatprep.subr.bf16.mxu0 0
    %1139 = vmatpush1.bf16.msra.mxu0 %v877
    %1140 = vmatprep.subr.bf16.mxu0 0
    %1141 = vmatpush1.bf16.msra.mxu0 %v880
    %1142 = vmatprep.subr.bf16.mxu0 0
    %1143 = vmatpush1.bf16.msra.mxu0 %v883
    %1144 = vmatprep.subr.bf16.mxu0 0
    %1145 = vmatpush1.bf16.msra.mxu0 %v886
    %1146 = vmatprep.subr.bf16.mxu0 0
    %1147 = vmatpush1.bf16.msra.mxu0 %v889
    %1148 = vmatprep.mubr.bf16.mxu0 %v374
    %1149 = vmatmul.mubr.bf16.gmra.mrb[0].mxu0 %v373
    %v1150 = vpop.f32.mrb[0].mxu0
    %v1151 = vadd.f32 %v518, %v1150
    %v1152 = vpop.f32.mrb[0].mxu0
    %v1153 = vpop.f32.mrb[0].mxu0
    %v1154 = vpop.f32.mrb[0].mxu0
    %1155 = vdwg.mxu0
    %1156 = vmatprep.subr.bf16.mxu0 0
    %1157 = vmatpush1.bf16.msra.mxu0 %v892
    %1158 = vmatprep.subr.bf16.mxu0 0
    %1159 = vmatpush1.bf16.msra.mxu0 %v895
    %1160 = vmatprep.subr.bf16.mxu0 0
    %1161 = vmatpush1.bf16.msra.mxu0 %v898
    %1162 = vmatprep.subr.bf16.mxu0 0
    %1163 = vmatpush1.bf16.msra.mxu0 %v901
    %1164 = vmatprep.subr.bf16.mxu0 0
    %1165 = vmatpush1.bf16.msra.mxu0 %v904
    %1166 = vmatprep.subr.bf16.mxu0 0
    %1167 = vmatpush1.bf16.msra.mxu0 %v907
    %1168 = vmatprep.subr.bf16.mxu0 0
    %1169 = vmatpush1.bf16.msra.mxu0 %v910
    %1170 = vmatprep.subr.bf16.mxu0 0
    %1171 = vmatpush1.bf16.msra.mxu0 %v913
    %1172 = vmatprep.subr.bf16.mxu0 0
    %1173 = vmatpush1.bf16.msra.mxu0 %v916
    %1174 = vmatprep.subr.bf16.mxu0 0
    %1175 = vmatpush1.bf16.msra.mxu0 %v919
    %1176 = vmatprep.subr.bf16.mxu0 0
    %1177 = vmatpush1.bf16.msra.mxu0 %v922
    %1178 = vmatprep.subr.bf16.mxu0 0
    %1179 = vmatpush1.bf16.msra.mxu0 %v925
    %1180 = vmatprep.subr.bf16.mxu0 0
    %1181 = vmatpush1.bf16.msra.mxu0 %v928
    %1182 = vmatprep.subr.bf16.mxu0 0
    %1183 = vmatpush1.bf16.msra.mxu0 %v931
    %1184 = vmatprep.subr.bf16.mxu0 0
    %1185 = vmatpush1.bf16.msra.mxu0 %v934
    %1186 = vmatprep.subr.bf16.mxu0 0
    %1187 = vmatpush1.bf16.msra.mxu0 %v937
    %1188 = vmatprep.mubr.bf16.mxu0 %v376
    %1189 = vmatmul.mubr.bf16.gmra.mrb[0].mxu0 %v375
    %v1190 = vpop.f32.mrb[0].mxu0
    %v1191 = vadd.f32 %v1151, %v1190
    %v1192 = vpop.f32.mrb[0].mxu0
    %v1193 = vpop.f32.mrb[0].mxu0
    %v1194 = vpop.f32.mrb[0].mxu0
    %1195 = vdwg.mxu0
    %v1196 = vmax.f32 %v1110, 0.0
    %v1197 = vmax.f32 %v1112, 0.0
    %v1198 = vmax.f32 %v1191, 0.0
    %v1199 = vpack.c.bf16 %v1196, %v1196
    %v1200 = vpack.c.bf16 %v1197, %v1197
    %v1201 = vpack.c.bf16 %v1198, %v1198
    %v1202 = vld [vmem:[#allocation12] sm:$0xff]
    %v1203 = vld [vmem:[#allocation12 + $0x8] sm:$0xff]
    %v1204 = vld [vmem:[#allocation12 + $0x10] sm:$0xff]
    %v1205 = vld [vmem:[#allocation12 + $0x18] sm:$0xff]
    %v1206 = vld [vmem:[#allocation12 + $0x20] sm:$0xff]
    %v1207 = vld [vmem:[#allocation12 + $0x28] sm:$0xff]
    %v1208 = vld [vmem:[#allocation12 + $0x30] sm:$0xff]
    %v1209 = vld [vmem:[#allocation12 + $0x38] sm:$0xff]
    %v1210 = vld [vmem:[#allocation12 + $0x40] sm:$0xff]
    %v1211 = vld [vmem:[#allocation12 + $0x48] sm:$0xff]
    %v1212 = vld [vmem:[#allocation12 + $0x50] sm:$0xff]
    %v1213 = vld [vmem:[#allocation12 + $0x58] sm:$0xff]
    %v1214 = vld [vmem:[#allocation12 + $0x60] sm:$0xff]
    %v1215 = vld [vmem:[#allocation12 + $0x68] sm:$0xff]
    %v1216 = vld [vmem:[#allocation12 + $0x70] sm:$0xff]
    %v1217 = vld [vmem:[#allocation12 + $0x78] sm:$0xff]
    %v1218 = vld [vmem:[#allocation12 + $0x80] sm:$0xff]
    %v1219 = vld [vmem:[#allocation12 + $0x88] sm:$0xff]
    %v1220 = vld [vmem:[#allocation12 + $0x90] sm:$0xff]
    %v1221 = vld [vmem:[#allocation12 + $0x98] sm:$0xff]
    %v1222 = vld [vmem:[#allocation12 + $0xa0] sm:$0xff]
    %v1223 = vld [vmem:[#allocation12 + $0xa8] sm:$0xff]
    %v1224 = vld [vmem:[#allocation12 + $0xb0] sm:$0xff]
    %v1225 = vld [vmem:[#allocation12 + $0xb8] sm:$0xff]
    %v1226 = vld [vmem:[#allocation12 + $0xc0] sm:$0xff]
    %v1227 = vld [vmem:[#allocation12 + $0xc8] sm:$0xff]
    %v1228 = vld [vmem:[#allocation12 + $0xd0] sm:$0xff]
    %v1229 = vld [vmem:[#allocation12 + $0xd8] sm:$0xff]
    %v1230 = vld [vmem:[#allocation12 + $0xe0] sm:$0xff]
    %v1231 = vld [vmem:[#allocation12 + $0xe8] sm:$0xff]
    %v1232 = vld [vmem:[#allocation12 + $0xf0] sm:$0xff]
    %v1233 = vld [vmem:[#allocation12 + $0xf8] sm:$0xff]
    %v1234 = vld [vmem:[#allocation12 + $0x100] sm:$0xff]
    %v1235 = vld [vmem:[#allocation12 + $0x108] sm:$0xff]
    %v1236 = vld [vmem:[#allocation12 + $0x110] sm:$0xff]
    %v1237 = vld [vmem:[#allocation12 + $0x118] sm:$0xff]
    %v1238 = vld [vmem:[#allocation12 + $0x120] sm:$0xff]
    %v1239 = vld [vmem:[#allocation12 + $0x128] sm:$0xff]
    %v1240 = vld [vmem:[#allocation12 + $0x130] sm:$0xff]
    %v1241 = vld [vmem:[#allocation12 + $0x138] sm:$0xff]
    %v1242 = vld [vmem:[#allocation12 + $0x140] sm:$0xff]
    %v1243 = vld [vmem:[#allocation12 + $0x148] sm:$0xff]
    %v1244 = vld [vmem:[#allocation12 + $0x150] sm:$0xff]
    %v1245 = vld [vmem:[#allocation12 + $0x158] sm:$0xff]
    %v1246 = vld [vmem:[#allocation12 + $0x160] sm:$0xff]
    %v1247 = vld [vmem:[#allocation12 + $0x168] sm:$0xff]
    %v1248 = vld [vmem:[#allocation12 + $0x170] sm:$0xff]
    %v1249 = vld [vmem:[#allocation12 + $0x178] sm:$0xff]
    %v1250 = vld [vmem:[%s8] sm:$0x3]
    %v1252 = vlaneseq
    %v1253 = vshrl.u32 %v1252, 7
    %v1254 = vsub.s32 0, %v1253
    %v1255 = vrot.slane %v1250, %v1254
    %v1256 = vlaneseq
    %v1257 = vshrl.u32 %v1256, 7
    %v1258 = vsub.s32 1, %v1257
    %v1259 = vrot.slane %v1250, %v1258
    %v1310 = vunpack.c.l.b16 %v1202
    %v1311 = vunpack.c.h.b16 %v1202
    %v1312 = vunpack.c.l.b16 %v1203
    %v1313 = vunpack.c.h.b16 %v1203
    %v1314 = vunpack.c.l.b16 %v1204
    %v1315 = vunpack.c.h.b16 %v1204
    %v1316 = vunpack.c.l.b16 %v1205
    %v1317 = vunpack.c.h.b16 %v1205
    %v1318 = vunpack.c.l.b16 %v1206
    %v1319 = vunpack.c.h.b16 %v1206
    %v1320 = vunpack.c.l.b16 %v1207
    %v1321 = vunpack.c.h.b16 %v1207
    %v1322 = vunpack.c.l.b16 %v1208
    %v1323 = vunpack.c.h.b16 %v1208
    %v1324 = vunpack.c.l.b16 %v1209
    %v1325 = vunpack.c.h.b16 %v1209
    %v1326 = vunpack.c.l.b16 %v1210
    %v1327 = vunpack.c.h.b16 %v1210
    %v1328 = vunpack.c.l.b16 %v1211
    %v1329 = vunpack.c.h.b16 %v1211
    %v1330 = vunpack.c.l.b16 %v1212
    %v1331 = vunpack.c.h.b16 %v1212
    %v1332 = vunpack.c.l.b16 %v1213
    %v1333 = vunpack.c.h.b16 %v1213
    %v1334 = vunpack.c.l.b16 %v1214
    %v1335 = vunpack.c.h.b16 %v1214
    %v1336 = vunpack.c.l.b16 %v1215
    %v1337 = vunpack.c.h.b16 %v1215
    %v1338 = vunpack.c.l.b16 %v1216
    %v1339 = vunpack.c.h.b16 %v1216
    %v1340 = vunpack.c.l.b16 %v1217
    %v1341 = vunpack.c.h.b16 %v1217
    %v1342 = vunpack.c.l.b16 %v1218
    %v1343 = vunpack.c.h.b16 %v1218
    %v1344 = vunpack.c.l.b16 %v1219
    %v1345 = vunpack.c.h.b16 %v1219
    %v1346 = vunpack.c.l.b16 %v1220
    %v1347 = vunpack.c.h.b16 %v1220
    %v1348 = vunpack.c.l.b16 %v1221
    %v1349 = vunpack.c.h.b16 %v1221
    %v1350 = vunpack.c.l.b16 %v1222
    %v1351 = vunpack.c.h.b16 %v1222
    %v1352 = vunpack.c.l.b16 %v1223
    %v1353 = vunpack.c.h.b16 %v1223
    %v1354 = vunpack.c.l.b16 %v1224
    %v1355 = vunpack.c.h.b16 %v1224
    %v1356 = vunpack.c.l.b16 %v1225
    %v1357 = vunpack.c.h.b16 %v1225
    %v1358 = vunpack.c.l.b16 %v1226
    %v1359 = vunpack.c.h.b16 %v1226
    %v1360 = vunpack.c.l.b16 %v1227
    %v1361 = vunpack.c.h.b16 %v1227
    %v1362 = vunpack.c.l.b16 %v1228
    %v1363 = vunpack.c.h.b16 %v1228
    %v1364 = vunpack.c.l.b16 %v1229
    %v1365 = vunpack.c.h.b16 %v1229
    %v1366 = vunpack.c.l.b16 %v1230
    %v1367 = vunpack.c.h.b16 %v1230
    %v1368 = vunpack.c.l.b16 %v1231
    %v1369 = vunpack.c.h.b16 %v1231
    %v1370 = vunpack.c.l.b16 %v1232
    %v1371 = vunpack.c.h.b16 %v1232
    %v1372 = vunpack.c.l.b16 %v1233
    %v1373 = vunpack.c.h.b16 %v1233
    %v1374 = vunpack.c.l.b16 %v1234
    %v1375 = vunpack.c.h.b16 %v1234
    %v1376 = vunpack.c.l.b16 %v1235
    %v1377 = vunpack.c.h.b16 %v1235
    %v1378 = vunpack.c.l.b16 %v1236
    %v1379 = vunpack.c.h.b16 %v1236
    %v1380 = vunpack.c.l.b16 %v1237
    %v1381 = vunpack.c.h.b16 %v1237
    %v1382 = vunpack.c.l.b16 %v1238
    %v1383 = vunpack.c.h.b16 %v1238
    %v1384 = vunpack.c.l.b16 %v1239
    %v1385 = vunpack.c.h.b16 %v1239
    %v1386 = vunpack.c.l.b16 %v1240
    %v1387 = vunpack.c.h.b16 %v1240
    %v1388 = vunpack.c.l.b16 %v1241
    %v1389 = vunpack.c.h.b16 %v1241
    %v1390 = vunpack.c.l.b16 %v1242
    %v1391 = vunpack.c.h.b16 %v1242
    %v1392 = vunpack.c.l.b16 %v1243
    %v1393 = vunpack.c.h.b16 %v1243
    %v1394 = vunpack.c.l.b16 %v1244
    %v1395 = vunpack.c.h.b16 %v1244
    %v1396 = vunpack.c.l.b16 %v1245
    %v1397 = vunpack.c.h.b16 %v1245
    %v1398 = vunpack.c.l.b16 %v1246
    %v1399 = vunpack.c.h.b16 %v1246
    %v1400 = vunpack.c.l.b16 %v1247
    %v1401 = vunpack.c.h.b16 %v1247
    %v1402 = vunpack.c.l.b16 %v1248
    %v1403 = vunpack.c.h.b16 %v1248
    %v1404 = vunpack.c.l.b16 %v1249
    %v1405 = vunpack.c.h.b16 %v1249
    %v1406 = vpack.c.b16 %v1312, %v1310
    %v1407 = vpack.c.b16 %v1313, %v1311
    %v1408 = vpack.c.b16 %v1316, %v1314
    %v1409 = vpack.c.b16 %v1317, %v1315
    %v1410 = vpack.c.b16 %v1320, %v1318
    %v1411 = vpack.c.b16 %v1321, %v1319
    %v1412 = vpack.c.b16 %v1324, %v1322
    %v1413 = vpack.c.b16 %v1325, %v1323
    %v1414 = vpack.c.b16 %v1328, %v1326
    %v1415 = vpack.c.b16 %v1329, %v1327
    %v1416 = vpack.c.b16 %v1332, %v1330
    %v1417 = vpack.c.b16 %v1333, %v1331
    %v1418 = vpack.c.b16 %v1336, %v1334
    %v1419 = vpack.c.b16 %v1337, %v1335
    %v1420 = vpack.c.b16 %v1340, %v1338
    %v1421 = vpack.c.b16 %v1341, %v1339
    %v1422 = vpack.c.b16 %v1344, %v1342
    %v1423 = vpack.c.b16 %v1345, %v1343
    %v1424 = vpack.c.b16 %v1348, %v1346
    %v1425 = vpack.c.b16 %v1349, %v1347
    %v1426 = vpack.c.b16 %v1352, %v1350
    %v1427 = vpack.c.b16 %v1353, %v1351
    %v1428 = vpack.c.b16 %v1356, %v1354
    %v1429 = vpack.c.b16 %v1357, %v1355
    %v1430 = vpack.c.b16 %v1360, %v1358
    %v1431 = vpack.c.b16 %v1361, %v1359
    %v1432 = vpack.c.b16 %v1364, %v1362
    %v1433 = vpack.c.b16 %v1365, %v1363
    %v1434 = vpack.c.b16 %v1368, %v1366
    %v1435 = vpack.c.b16 %v1369, %v1367
    %v1436 = vpack.c.b16 %v1372, %v1370
    %v1437 = vpack.c.b16 %v1373, %v1371
    %v1438 = vpack.c.b16 %v1376, %v1374
    %v1439 = vpack.c.b16 %v1377, %v1375
    %v1440 = vpack.c.b16 %v1380, %v1378
    %v1441 = vpack.c.b16 %v1381, %v1379
    %v1442 = vpack.c.b16 %v1384, %v1382
    %v1443 = vpack.c.b16 %v1385, %v1383
    %v1444 = vpack.c.b16 %v1388, %v1386
    %v1445 = vpack.c.b16 %v1389, %v1387
    %v1446 = vpack.c.b16 %v1392, %v1390
    %v1447 = vpack.c.b16 %v1393, %v1391
    %v1448 = vpack.c.b16 %v1396, %v1394
    %v1449 = vpack.c.b16 %v1397, %v1395
    %v1450 = vpack.c.b16 %v1400, %v1398
    %v1451 = vpack.c.b16 %v1401, %v1399
    %v1452 = vpack.c.b16 %v1404, %v1402
    %v1453 = vpack.c.b16 %v1405, %v1403
    %1502 = vmatprep.subr.bf16.mxu0 %v1407
    %1503 = vmatpush1.bf16.msra.mxu0 %v1406
    %1504 = vmatprep.subr.bf16.mxu0 %v1409
    %1505 = vmatpush1.bf16.msra.mxu0 %v1408
    %1506 = vmatprep.subr.bf16.mxu0 %v1411
    %1507 = vmatpush1.bf16.msra.mxu0 %v1410
    %1508 = vmatprep.subr.bf16.mxu0 %v1413
    %1509 = vmatpush1.bf16.msra.mxu0 %v1412
    %1510 = vmatprep.subr.bf16.mxu0 %v1415
    %1511 = vmatpush1.bf16.msra.mxu0 %v1414
    %1512 = vmatprep.subr.bf16.mxu0 %v1417
    %1513 = vmatpush1.bf16.msra.mxu0 %v1416
    %1514 = vmatprep.subr.bf16.mxu0 %v1419
    %1515 = vmatpush1.bf16.msra.mxu0 %v1418
    %1516 = vmatprep.subr.bf16.mxu0 %v1421
    %1517 = vmatpush1.bf16.msra.mxu0 %v1420
    %1518 = vmatprep.subr.bf16.mxu0 %v1423
    %1519 = vmatpush1.bf16.msra.mxu0 %v1422
    %1520 = vmatprep.subr.bf16.mxu0 %v1425
    %1521 = vmatpush1.bf16.msra.mxu0 %v1424
    %1522 = vmatprep.subr.bf16.mxu0 %v1427
    %1523 = vmatpush1.bf16.msra.mxu0 %v1426
    %1524 = vmatprep.subr.bf16.mxu0 %v1429
    %1525 = vmatpush1.bf16.msra.mxu0 %v1428
    %1526 = vmatprep.subr.bf16.mxu0 %v1431
    %1527 = vmatpush1.bf16.msra.mxu0 %v1430
    %1528 = vmatprep.subr.bf16.mxu0 %v1433
    %1529 = vmatpush1.bf16.msra.mxu0 %v1432
    %1530 = vmatprep.subr.bf16.mxu0 %v1435
    %1531 = vmatpush1.bf16.msra.mxu0 %v1434
    %1532 = vmatprep.subr.bf16.mxu0 %v1437
    %1533 = vmatpush1.bf16.msra.mxu0 %v1436
    %1534 = vmatprep.mubr.bf16.mxu0 %v1200
    %1535 = vmatmul.mubr.bf16.gmra.mrb[0].mxu0 %v1199
    %v1536 = vpop.f32.mrb[0].mxu0
    %v1537 = vadd.f32 %v1255, %v1536
    %v1538 = vpop.f32.mrb[0].mxu0
    %v1539 = vadd.f32 %v1259, %v1538
    %v1540 = vpop.f32.mrb[0].mxu0
    %v1541 = vpop.f32.mrb[0].mxu0
    %1542 = vdwg.mxu0
    %1543 = vmatprep.subr.bf16.mxu0 %v1439
    %1544 = vmatpush1.bf16.msra.mxu0 %v1438
    %1545 = vmatprep.subr.bf16.mxu0 %v1441
    %1546 = vmatpush1.bf16.msra.mxu0 %v1440
    %1547 = vmatprep.subr.bf16.mxu0 %v1443
    %1548 = vmatpush1.bf16.msra.mxu0 %v1442
    %1549 = vmatprep.subr.bf16.mxu0 %v1445
    %1550 = vmatpush1.bf16.msra.mxu0 %v1444
    %1551 = vmatprep.subr.bf16.mxu0 %v1447
    %1552 = vmatpush1.bf16.msra.mxu0 %v1446
    %1553 = vmatprep.subr.bf16.mxu0 %v1449
    %1554 = vmatpush1.bf16.msra.mxu0 %v1448
    %1555 = vmatprep.subr.bf16.mxu0 %v1451
    %1556 = vmatpush1.bf16.msra.mxu0 %v1450
    %1557 = vmatprep.subr.bf16.mxu0 %v1453
    %1558 = vmatpush1.bf16.msra.mxu0 %v1452
    %1559 = vmatprep.subr.bf16.mxu0 0
    %1560 = vmatpush1.bf16.msra.mxu0 0
    %1561 = vmatprep.subr.bf16.mxu0 0
    %1562 = vmatpush1.bf16.msra.mxu0 0
    %1563 = vmatprep.subr.bf16.mxu0 0
    %1564 = vmatpush1.bf16.msra.mxu0 0
    %1565 = vmatprep.subr.bf16.mxu0 0
    %1566 = vmatpush1.bf16.msra.mxu0 0
    %1567 = vmatprep.subr.bf16.mxu0 0
    %1568 = vmatpush1.bf16.msra.mxu0 0
    %1569 = vmatprep.subr.bf16.mxu0 0
    %1570 = vmatpush1.bf16.msra.mxu0 0
    %1571 = vmatprep.subr.bf16.mxu0 0
    %1572 = vmatpush1.bf16.msra.mxu0 0
    %1573 = vmatprep.subr.bf16.mxu0 0
    %1574 = vmatpush1.bf16.msra.mxu0 0
    %1575 = vmatprep.mubr.bf16.mxu0 0
    %1576 = vmatmul.mubr.bf16.gmra.mrb[0].mxu0 %v1201
    %v1577 = vpop.f32.mrb[0].mxu0
    %v1578 = vadd.f32 %v1537, %v1577
    %v1579 = vpop.f32.mrb[0].mxu0
    %v1580 = vadd.f32 %v1539, %v1579
    %v1581 = vpop.f32.mrb[0].mxu0
    %v1582 = vpop.f32.mrb[0].mxu0
    %1583 = vdwg.mxu0
    %v1584 = vmax.f32 %v1578, 0.0
    %v1585 = vmax.f32 %v1580, 0.0
    %v1586 = vld [vmem:[%s9] sm:$0x3]
    %v1588 = vlaneseq
    %v1589 = vshrl.u32 %v1588, 7
    %v1590 = vsub.s32 0, %v1589
    %v1591 = vrot.slane %v1586, %v1590
    %v1592 = vlaneseq
    %v1593 = vshrl.u32 %v1592, 7
    %v1594 = vsub.s32 1, %v1593
    %v1595 = vrot.slane %v1586, %v1594
    %v1598 = vmul.f32 %v1584, %v1591
    %v1599 = vmul.f32 %v1585, %v1595
    %v1600 = vadd.f32 %v1598, %v1599
    %1601 = vadd.xlane.f32.xlu0 %v1600
    %v1602 = vpop.xlane.xlu0 %1601
    %v1603 = vld [vmem:[#allocation2] sm:$0x1]
    %v1605 = vlaneseq
    %v1606 = vshrl.u32 %v1605, 7
    %v1607 = vsub.s32 0, %v1606
    %v1608 = vrot.slane %v1603, %v1607
    %v1610 = vadd.f32 %v1602, %v1608
    %1612 = vset.pattern.permute.xlu0 0
    %1613 = vperm.xlu0 %1612, %v1610
    %v1614 = vpop.permute.xlu0 %1613
    %v1615 = vlaneseq
    %v1616 = vand.u32 %v1615, 127
    %v1617 = vlaneseq
    %v1618 = vshrl.u32 %v1617, 7
    %v1619 = vsub.s32 %v1616, %v1618
    %v1620 = vrot.slane %v1614, %v1619
    %vm1622 = vcmask 57344
    %1623 = vst.msk [vmem:[#allocation14] sm:$0x1] %vm1622, %v1620
    // Predicated region
    $region70: #{tpu_custom_call.1} parent=1 // pred_check
      _
    $region71: #{tpu_custom_call.1} parent=1 // pred_check_branch
      %1625 = sbr.rel (0) target = $region73
    $region72: #{tpu_custom_call.1} parent=1 // pred_region
      %s1627 = ssub.s32 16, 16
      %1628 = vsyncadd [#allocation5], %s1627
      %s1630 = sshll.u32 [#allocation14], 4
      %s1631 = int_to_ptr.vmem [resolvable:$true] %s1630
      %1633 = dma.vmem_to_hbm [thread:$0]  %s1631, 16, %s11, [#allocation5]
    $region73: #{tpu_custom_call.1} parent=1 // pred_fallthru
      _
    // Predicated region
    $region74: #{tpu_custom_call.1} parent=1 // pred_check
      _
    $region75: #{tpu_custom_call.1} parent=1 // pred_check_branch
      %1635 = sbr.rel (0) target = $region77
    $region76: #{tpu_custom_call.1} parent=1 // pred_region
      %1636 = dma.done [#allocation5], 16
    $region77: #{tpu_custom_call.1} parent=1 // pred_fallthru
      _
    %1637 = vsyncpa [#allocation4], 1
    %1638 = vsyncpa [#allocation7], 1
    %1639 = vsyncpa [#allocation10], 1
    %1640 = vsyncpa [#allocation13], 1
    %1641 = vsyncpa [#allocation5], 1

</llo_original>
